<compile_context>
chip_gen: v7x
topology: tpu7x:2x2x1
jax: 0.10.0
libtpu: 0.0.40
codegen_flags: <defaults>
</compile_context>

<pallas_src>
import math

import jax
import jax.numpy as jnp
from jax import lax
from jax.experimental import pallas as pl
from jax.experimental.pallas import tpu as pltpu


# ---------------------------------------------------------------------------
# helpers
# ---------------------------------------------------------------------------
def _round_up(x, m):
    return ((x + m - 1) // m) * m


def _cdiv(a, b):
    return (a + b - 1) // b


def _device_kind():
    try:
        return jax.devices()[0].device_kind.lower()
    except Exception:
        return ""


def _is_v5e(kind):
    return ("v5 lite" in kind) or ("v5e" in kind) or ("v5litepod" in kind)


def _tensorcores_per_chip(kind):
    # v7x has 2 TensorCores per chip; v5e/v6e have 1.
    return 2 if "v7" in kind else 1


def _full_spec(a):
    nd = a.ndim
    return pl.BlockSpec(a.shape, lambda i, _nd=nd: (0,) * _nd)


# ---------------------------------------------------------------------------
# Kernel factory: whole MLP chain (shared block + all heads) for one batch tile.
# Batch lives on the lane (last) axis; every matmul is W^T @ h.
# ---------------------------------------------------------------------------
def _make_kernel(fused, n_stack, n_heads):
    def kernel(x_ref, w_in0_ref, b_in0_ref, w_stack_ref, b_stack_ref,
               w0_ref, b0_ref, w1_ref, b1_ref, w2_ref, b2_ref, out_ref):
        cdt = w_in0_ref.dtype  # matmul compute dtype (f32, or bf16 on v6e/v7x)

        def elu(v):
            # torch.nn.ELU(alpha=1.0); where() selects elementwise so the exp branch
            # overflowing for large positive v never leaks.
            return jnp.where(v > 0, v, jnp.exp(v) - 1.0)

        def linear(wT, h, bT):
            # y = W^T @ h: batch stays on lanes, MXU f32 accumulation, bias-add in f32.
            return jnp.dot(wT, h.astype(cdt), preferred_element_type=jnp.float32) + bT

        # --- shared input block: Linear+ELU, then the stacked (N,N) layers, ELU after
        #     each (the last ELU is the ParameterizerNN wrapper activation) ---
        h = elu(linear(w_in0_ref[...], x_ref[...], b_in0_ref[...]))
        for li in range(n_stack):
            h = elu(linear(w_stack_ref[li], h, b_stack_ref[li]))

        if fused:
            # all heads fused: layer0 concatenated, layers 1/2 block-diagonal
            g = elu(linear(w0_ref[...], h, b0_ref[...]))
            g = elu(linear(w1_ref[...], g, b1_ref[...]))
            out_ref[...] = linear(w2_ref[...], g, b2_ref[...]).astype(out_ref.dtype)
        else:
            # stacked per-head weights; short static loop (scalability path)
            odp = out_ref.shape[0] // n_heads
            for j in range(n_heads):
                g = elu(linear(w0_ref[j], h, b0_ref[j]))
                g = elu(linear(w1_ref[j], g, b1_ref[j]))
                oj = linear(w2_ref[j], g, b2_ref[j])
                out_ref[j * odp:(j + 1) * odp, :] = oj.astype(out_ref.dtype)

    return kernel


# ---------------------------------------------------------------------------
# Parameter init (deterministic, mirrors the PyTorch module's layer shapes)
# ---------------------------------------------------------------------------
def init_params(key, input_dim, output_dim, dist_params, num_hidden_layers=2,
                num_neurons=50):
    def make_block(key, in_dim, out_dim, width, n_hidden):
        # NNBlock: Linear(in,width), n_hidden x Linear(width,width), Linear(width,out)
        dims = [in_dim] + [width] * (n_hidden + 1) + [out_dim]
        layers = []
        for d_in, d_out in zip(dims[:-1], dims[1:]):
            key, kw, kb = jax.random.split(key, 3)
            w = jax.random.normal(kw, (d_in, d_out), jnp.float32) * 0.1
            b = jax.random.normal(kb, (1, d_out), jnp.float32) * 0.01
            layers.append((w, b))
        return key, layers

    key, input_block = make_block(key, input_dim, num_neurons, num_neurons,
                                  num_hidden_layers)
    # Heads mirror the torch code: NNBlock(num_neurons, output_dim, num_hidden_layers=1)
    # with the DEFAULT hidden width (50), since num_neurons is not forwarded.
    heads = {}
    for p in dist_params:
        key, heads[p] = make_block(key, num_neurons, output_dim, 50, 1)
    return {"input": input_block, "heads": heads}


# ---------------------------------------------------------------------------
# Wrapper calling pallas_call
# ---------------------------------------------------------------------------
def parameterizer_nn_forward(params, inputs, input_dim, output_dim, dist_params,
                             batch_tile=2048, compute_dtype=jnp.float32,
                             head_fuse_max_width=None):
    kind = _device_kind()
    if _is_v5e(kind):
        compute_dtype = jnp.float32  # v5e: no bf16 VPU/EUP; casts are pure overhead
    if head_fuse_max_width is None:
        head_fuse_max_width = 128 if _is_v5e(kind) else 256

    # inputs.view(-1, input_dim)
    x = inputs.reshape(-1, input_dim).astype(jnp.float32)
    b = x.shape[0]

    # ---- batch-on-lanes tiling: batch is the lane (last) axis, padded to 128 ----
    batch_tile = max(128, _round_up(batch_tile, 128))
    b128 = _round_up(b, 128)
    tile = min(batch_tile, b128)
    # Split only for v7x megacore and only if each half keeps >= 256 rows;
    # single-TC v5e/v6e never get a forced split (it only adds per-step overhead).
    if _tensorcores_per_chip(kind) >= 2 and tile >= b128 and b128 >= 512:
        tile = _round_up(_cdiv(b128, 2), 128)
    b_pad = _round_up(b, tile)

    # ---- derived dims (feature axes padded to sublane multiples of 8) ----
    w_in0, b_in0 = params["input"][0]                 # (input_dim, N), (1, N)
    N = w_in0.shape[1]                                # input-block width
    stack_layers = params["input"][1:]                # S x (N, N)
    S = len(stack_layers)
    heads = [params["heads"][p] for p in dist_params]
    H = len(heads)
    M = heads[0][0][0].shape[1]                       # head hidden width (torch default 50)
    Ip = _round_up(input_dim, 8)
    Np = _round_up(N, 8)
    Mp = _round_up(M, 8)
    odp = _round_up(output_dim, 8)
    HMp = H * Mp
    out_rows = H * odp                                # lane-dense output rows (batch on lanes)
    fused = HMp <= head_fuse_max_width

    f32 = jnp.float32
    cdt = compute_dtype

    # ---- x transposed & zero-padded: (Ip, b_pad); batch lands on the lane axis ----
    xT = jnp.zeros((Ip, b_pad), f32).at[:input_dim, :b].set(x.T)

    # ---- pack shared input block (transposed, zero-padded) ----
    wT_in0 = jnp.zeros((Np, Ip), f32).at[:N, :input_dim].set(w_in0.T)
    bT_in0 = jnp.zeros((Np, 1), f32).at[:N, 0].set(b_in0[0])
    wT_stack = jnp.zeros((S, Np, Np), f32).at[:, :N, :N].set(
        jnp.stack([w.T for (w, _) in stack_layers], axis=0))
    bT_stack = jnp.zeros((S, Np, 1), f32).at[:, :N, 0].set(
        jnp.stack([bb[0] for (_, bb) in stack_layers], axis=0))

    # ---- pack heads ----
    if fused:
        w0 = jnp.zeros((HMp, Np), f32); b0 = jnp.zeros((HMp, 1), f32)
        w1 = jnp.zeros((HMp, HMp), f32); b1 = jnp.zeros((HMp, 1), f32)
        w2 = jnp.zeros((out_rows, HMp), f32); b2 = jnp.zeros((out_rows, 1), f32)
        for j, hd in enumerate(heads):
            (hw0, hb0), (hw1, hb1), (hw2, hb2) = hd
            r, ro = j * Mp, j * odp
            w0 = w0.at[r:r + M, :N].set(hw0.T)
            b0 = b0.at[r:r + M, 0].set(hb0[0])
            w1 = w1.at[r:r + M, r:r + M].set(hw1.T)
            b1 = b1.at[r:r + M, 0].set(hb1[0])
            w2 = w2.at[ro:ro + output_dim, r:r + M].set(hw2.T)
            b2 = b2.at[ro:ro + output_dim, 0].set(hb2[0])
    else:
        w0 = jnp.zeros((H, Mp, Np), f32); b0 = jnp.zeros((H, Mp, 1), f32)
        w1 = jnp.zeros((H, Mp, Mp), f32); b1 = jnp.zeros((H, Mp, 1), f32)
        w2 = jnp.zeros((H, odp, Mp), f32); b2 = jnp.zeros((H, odp, 1), f32)
        for j, hd in enumerate(heads):
            (hw0, hb0), (hw1, hb1), (hw2, hb2) = hd
            w0 = w0.at[j, :M, :N].set(hw0.T)
            b0 = b0.at[j, :M, 0].set(hb0[0])
            w1 = w1.at[j, :M, :M].set(hw1.T)
            b1 = b1.at[j, :M, 0].set(hb1[0])
            w2 = w2.at[j, :output_dim, :M].set(hw2.T)
            b2 = b2.at[j, :output_dim, 0].set(hb2[0])

    # Weights in compute dtype (bf16 on v6e/v7x if requested); biases stay f32.
    xT_c = xT.astype(cdt)
    mats = [wT_in0.astype(cdt), bT_in0, wT_stack.astype(cdt), bT_stack,
            w0.astype(cdt), b0, w1.astype(cdt), b1, w2.astype(cdt), b2]

    grid = (b_pad // tile,)
    x_spec = pl.BlockSpec((Ip, tile), lambda i: (0, i))
    out_spec = pl.BlockSpec((out_rows, tile), lambda i: (0, i))   # lane-dense store

    # Advisory cost estimate so XLA schedules this small fused kernel sensibly.
    mac_per_col = sum(math.prod(m.shape) for m in mats[0::2])
    flops = 2 * b_pad * mac_per_col
    transcendentals = b_pad * ((1 + S) * Np + 2 * HMp)
    bytes_accessed = (int(xT_c.size) * xT_c.dtype.itemsize
                      + b_pad * out_rows * 4
                      + sum(int(a.size) * a.dtype.itemsize for a in mats))
    cost = pl.CostEstimate(flops=int(flops), transcendentals=int(transcendentals),
                           bytes_accessed=int(bytes_accessed))

    out_all = pl.pallas_call(
        _make_kernel(fused, S, H),
        out_shape=jax.ShapeDtypeStruct((out_rows, b_pad), jnp.float32),
        grid_spec=pltpu.PrefetchScalarGridSpec(
            num_scalar_prefetch=0,
            grid=grid,
            in_specs=[x_spec] + [_full_spec(a) for a in mats],
            out_specs=out_spec,
        ),
        compiler_params=pltpu.CompilerParams(
            dimension_semantics=("parallel",),
        ),
        cost_estimate=cost,
    )(xT_c, *mats)

    # (out_rows, b_pad) -> dict of (b, output_dim)
    out_bt = out_all[:, :b].T
    return {p: out_bt[:, j * odp:j * odp + output_dim]
            for j, p in enumerate(dist_params)}


# ---------------------------------------------------------------------------
# Pure-JAX reference (validation only; uses the unpacked per-layer params)
# ---------------------------------------------------------------------------
def reference_forward(params, inputs, input_dim, dist_params):
    def elu(v):
        return jnp.where(v > 0, v, jnp.exp(v) - 1.0)

    def run_block(layers, h):
        for li, (w, bb) in enumerate(layers):
            h = jnp.dot(h, w, precision=lax.Precision.HIGHEST) + bb
            if li < len(layers) - 1:
                h = elu(h)
        return h

    h = inputs.reshape(-1, input_dim).astype(jnp.float32)
    h = elu(run_block(params["input"], h))
    return {p: run_block(params["heads"][p], h) for p in dist_params}


# ---------------------------------------------------------------------------
if __name__ == "__main__":
    input_dim = 16
    output_dim = 4
    num_neurons = 32
    num_hidden_layers = 2
    dist_params = ["mu", "sigma"]

    key = jax.random.PRNGKey(0)
    key, kx = jax.random.split(key)
    # inputs of shape (2, 4, 16, 16) -> view(-1, 16) = (128, 16)
    inputs = jax.random.normal(kx, (2, 4, 16, input_dim), jnp.float32)

    params = init_params(
        key, input_dim, output_dim, dist_params,
        num_hidden_layers=num_hidden_layers, num_neurons=num_neurons,
    )
    ref = reference_forward(params, inputs, input_dim, dist_params)

    # f32, fused-heads path (default)
    out = parameterizer_nn_forward(params, inputs, input_dim, output_dim, dist_params)
    jax.block_until_ready(out)
    for p in dist_params:
        assert out[p].shape == (2 * 4 * 16, output_dim), out[p].shape
        assert jnp.allclose(out[p], ref[p], atol=1e-5, rtol=1e-5), p

    # uneven flattened batch (exercises the batch padding path): (3, 11, 16) -> (33, 16)
    key, kx2 = jax.random.split(key)
    inputs2 = jax.random.normal(kx2, (3, 11, input_dim), jnp.float32)
    out2 = parameterizer_nn_forward(params, inputs2, input_dim, output_dim, dist_params)
    jax.block_until_ready(out2)
    ref2 = reference_forward(params, inputs2, input_dim, dist_params)
    for p in dist_params:
        assert out2[p].shape == (33, output_dim), out2[p].shape
        assert jnp.allclose(out2[p], ref2[p], atol=1e-5, rtol=1e-5), p

    # stacked per-head path (used automatically when H*head_width exceeds one MXU tile)
    out3 = parameterizer_nn_forward(params, inputs, input_dim, output_dim, dist_params,
                                    head_fuse_max_width=1)
    jax.block_until_ready(out3)
    for p in dist_params:
        assert jnp.allclose(out3[p], ref[p], atol=1e-5, rtol=1e-5), p

    # bf16 MXU path (v6e/v7x optimization; automatically forced back to f32 on v5e)
    out_bf16 = parameterizer_nn_forward(params, inputs, input_dim, output_dim,
                                        dist_params, compute_dtype=jnp.bfloat16)
    jax.block_until_ready(out_bf16)
    for p in dist_params:
        assert jnp.allclose(out_bf16[p], ref[p], atol=5e-2, rtol=5e-2), p

    print("KERNEL_OK")
</pallas_src>

<mosaic_0001>
module attributes {stable_mosaic.version = 11 : i64} {
  func.func @kernel(%arg0: i32, %arg1: memref<16x128xf32, #tpu.memory_space<vmem>>, %arg2: memref<32x16xf32, #tpu.memory_space<vmem>>, %arg3: memref<32x1xf32, #tpu.memory_space<vmem>>, %arg4: memref<3x32x32xf32, #tpu.memory_space<vmem>>, %arg5: memref<3x32x1xf32, #tpu.memory_space<vmem>>, %arg6: memref<112x32xf32, #tpu.memory_space<vmem>>, %arg7: memref<112x1xf32, #tpu.memory_space<vmem>>, %arg8: memref<112x112xf32, #tpu.memory_space<vmem>>, %arg9: memref<112x1xf32, #tpu.memory_space<vmem>>, %arg10: memref<16x112xf32, #tpu.memory_space<vmem>>, %arg11: memref<16x1xf32, #tpu.memory_space<vmem>>, %arg12: memref<16x128xf32, #tpu.memory_space<vmem>>) attributes {dimension_semantics = [#tpu.dimension_semantics<parallel>], iteration_bounds = array<i64: 1>, scalar_prefetch = 0 : i64, scratch_operands = 0 : i64, tpu.core_type = #tpu.core_type<tc>, window_params = [{transform_indices = @transform_0, window_bounds = array<i64: 16, 128>}, {pipeline_mode = #tpu.pipeline_mode<synchronous>, transform_indices = @transform_1, window_bounds = array<i64: 32, 16>}, {pipeline_mode = #tpu.pipeline_mode<synchronous>, transform_indices = @transform_2, window_bounds = array<i64: 32, 1>}, {pipeline_mode = #tpu.pipeline_mode<synchronous>, transform_indices = @transform_3, window_bounds = array<i64: 3, 32, 32>}, {pipeline_mode = #tpu.pipeline_mode<synchronous>, transform_indices = @transform_4, window_bounds = array<i64: 3, 32, 1>}, {pipeline_mode = #tpu.pipeline_mode<synchronous>, transform_indices = @transform_5, window_bounds = array<i64: 112, 32>}, {pipeline_mode = #tpu.pipeline_mode<synchronous>, transform_indices = @transform_6, window_bounds = array<i64: 112, 1>}, {pipeline_mode = #tpu.pipeline_mode<synchronous>, transform_indices = @transform_7, window_bounds = array<i64: 112, 112>}, {pipeline_mode = #tpu.pipeline_mode<synchronous>, transform_indices = @transform_8, window_bounds = array<i64: 112, 1>}, {pipeline_mode = #tpu.pipeline_mode<synchronous>, transform_indices = @transform_9, window_bounds = array<i64: 16, 112>}, {pipeline_mode = #tpu.pipeline_mode<synchronous>, transform_indices = @transform_10, window_bounds = array<i64: 16, 1>}, {transform_indices = @transform_11, window_bounds = array<i64: 16, 128>}]} {
    %c0 = arith.constant 0 : index
    %c0_0 = arith.constant 0 : index
    %0 = vector.load %arg2[%c0, %c0_0] : memref<32x16xf32, #tpu.memory_space<vmem>>, vector<32x16xf32>
    %c0_1 = arith.constant 0 : index
    %c0_2 = arith.constant 0 : index
    %1 = vector.load %arg1[%c0_1, %c0_2] : memref<16x128xf32, #tpu.memory_space<vmem>>, vector<16x128xf32>
    %c0_3 = arith.constant 0 : index
    %c0_4 = arith.constant 0 : index
    %2 = vector.load %arg3[%c0_3, %c0_4] : memref<32x1xf32, #tpu.memory_space<vmem>>, vector<32x1xf32>
    %cst = arith.constant dense<0.000000e+00> : vector<32x128xf32>
    %3 = tpu.matmul %0, %1, %cst {dimension_numbers = #tpu.dot_dimension_numbers<[1], [0], [0], [1], [0, 0, 1, 1], [], []>} : vector<32x16xf32>, vector<16x128xf32>, vector<32x128xf32> -> vector<32x128xf32>
    %4 = vector.broadcast %2 : vector<32x1xf32> to vector<32x128xf32>
    %5 = arith.addf %3, %4 : vector<32x128xf32>
    %cst_5 = arith.constant 0.000000e+00 : f32
    %6 = vector.broadcast %cst_5 : f32 to vector<32x128xf32>
    %7 = arith.cmpf ogt, %5, %6 : vector<32x128xf32>
    %8 = math.exp %5 : vector<32x128xf32>
    %cst_6 = arith.constant 1.000000e+00 : f32
    %9 = vector.broadcast %cst_6 : f32 to vector<32x128xf32>
    %10 = arith.subf %8, %9 : vector<32x128xf32>
    %11 = arith.select %7, %5, %10 : vector<32x128xi1>, vector<32x128xf32>
    %c0_7 = arith.constant 0 : index
    %c0_8 = arith.constant 0 : index
    %c0_9 = arith.constant 0 : index
    %12 = vector.load %arg4[%c0_7, %c0_8, %c0_9] : memref<3x32x32xf32, #tpu.memory_space<vmem>>, vector<1x32x32xf32>
    %13 = vector.shape_cast %12 : vector<1x32x32xf32> to vector<32x32xf32>
    %c0_10 = arith.constant 0 : index
    %c0_11 = arith.constant 0 : index
    %c0_12 = arith.constant 0 : index
    %14 = vector.load %arg5[%c0_10, %c0_11, %c0_12] : memref<3x32x1xf32, #tpu.memory_space<vmem>>, vector<1x32x1xf32>
    %15 = vector.shape_cast %14 : vector<1x32x1xf32> to vector<32x1xf32>
    %cst_13 = arith.constant dense<0.000000e+00> : vector<32x128xf32>
    %16 = tpu.matmul %13, %11, %cst_13 {dimension_numbers = #tpu.dot_dimension_numbers<[1], [0], [0], [1], [0, 0, 1, 1], [], []>} : vector<32x32xf32>, vector<32x128xf32>, vector<32x128xf32> -> vector<32x128xf32>
    %17 = vector.broadcast %15 : vector<32x1xf32> to vector<32x128xf32>
    %18 = arith.addf %16, %17 : vector<32x128xf32>
    %cst_14 = arith.constant 0.000000e+00 : f32
    %19 = vector.broadcast %cst_14 : f32 to vector<32x128xf32>
    %20 = arith.cmpf ogt, %18, %19 : vector<32x128xf32>
    %21 = math.exp %18 : vector<32x128xf32>
    %cst_15 = arith.constant 1.000000e+00 : f32
    %22 = vector.broadcast %cst_15 : f32 to vector<32x128xf32>
    %23 = arith.subf %21, %22 : vector<32x128xf32>
    %24 = arith.select %20, %18, %23 : vector<32x128xi1>, vector<32x128xf32>
    %c1 = arith.constant 1 : index
    %c0_16 = arith.constant 0 : index
    %c0_17 = arith.constant 0 : index
    %25 = vector.load %arg4[%c1, %c0_16, %c0_17] : memref<3x32x32xf32, #tpu.memory_space<vmem>>, vector<1x32x32xf32>
    %26 = vector.shape_cast %25 : vector<1x32x32xf32> to vector<32x32xf32>
    %c1_18 = arith.constant 1 : index
    %c0_19 = arith.constant 0 : index
    %c0_20 = arith.constant 0 : index
    %27 = vector.load %arg5[%c1_18, %c0_19, %c0_20] : memref<3x32x1xf32, #tpu.memory_space<vmem>>, vector<1x32x1xf32>
    %28 = vector.shape_cast %27 : vector<1x32x1xf32> to vector<32x1xf32>
    %cst_21 = arith.constant dense<0.000000e+00> : vector<32x128xf32>
    %29 = tpu.matmul %26, %24, %cst_21 {dimension_numbers = #tpu.dot_dimension_numbers<[1], [0], [0], [1], [0, 0, 1, 1], [], []>} : vector<32x32xf32>, vector<32x128xf32>, vector<32x128xf32> -> vector<32x128xf32>
    %30 = vector.broadcast %28 : vector<32x1xf32> to vector<32x128xf32>
    %31 = arith.addf %29, %30 : vector<32x128xf32>
    %cst_22 = arith.constant 0.000000e+00 : f32
    %32 = vector.broadcast %cst_22 : f32 to vector<32x128xf32>
    %33 = arith.cmpf ogt, %31, %32 : vector<32x128xf32>
    %34 = math.exp %31 : vector<32x128xf32>
    %cst_23 = arith.constant 1.000000e+00 : f32
    %35 = vector.broadcast %cst_23 : f32 to vector<32x128xf32>
    %36 = arith.subf %34, %35 : vector<32x128xf32>
    %37 = arith.select %33, %31, %36 : vector<32x128xi1>, vector<32x128xf32>
    %c2 = arith.constant 2 : index
    %c0_24 = arith.constant 0 : index
    %c0_25 = arith.constant 0 : index
    %38 = vector.load %arg4[%c2, %c0_24, %c0_25] : memref<3x32x32xf32, #tpu.memory_space<vmem>>, vector<1x32x32xf32>
    %39 = vector.shape_cast %38 : vector<1x32x32xf32> to vector<32x32xf32>
    %c2_26 = arith.constant 2 : index
    %c0_27 = arith.constant 0 : index
    %c0_28 = arith.constant 0 : index
    %40 = vector.load %arg5[%c2_26, %c0_27, %c0_28] : memref<3x32x1xf32, #tpu.memory_space<vmem>>, vector<1x32x1xf32>
    %41 = vector.shape_cast %40 : vector<1x32x1xf32> to vector<32x1xf32>
    %cst_29 = arith.constant dense<0.000000e+00> : vector<32x128xf32>
    %42 = tpu.matmul %39, %37, %cst_29 {dimension_numbers = #tpu.dot_dimension_numbers<[1], [0], [0], [1], [0, 0, 1, 1], [], []>} : vector<32x32xf32>, vector<32x128xf32>, vector<32x128xf32> -> vector<32x128xf32>
    %43 = vector.broadcast %41 : vector<32x1xf32> to vector<32x128xf32>
    %44 = arith.addf %42, %43 : vector<32x128xf32>
    %cst_30 = arith.constant 0.000000e+00 : f32
    %45 = vector.broadcast %cst_30 : f32 to vector<32x128xf32>
    %46 = arith.cmpf ogt, %44, %45 : vector<32x128xf32>
    %47 = math.exp %44 : vector<32x128xf32>
    %cst_31 = arith.constant 1.000000e+00 : f32
    %48 = vector.broadcast %cst_31 : f32 to vector<32x128xf32>
    %49 = arith.subf %47, %48 : vector<32x128xf32>
    %50 = arith.select %46, %44, %49 : vector<32x128xi1>, vector<32x128xf32>
    %c0_32 = arith.constant 0 : index
    %c0_33 = arith.constant 0 : index
    %51 = vector.load %arg6[%c0_32, %c0_33] : memref<112x32xf32, #tpu.memory_space<vmem>>, vector<112x32xf32>
    %c0_34 = arith.constant 0 : index
    %c0_35 = arith.constant 0 : index
    %52 = vector.load %arg7[%c0_34, %c0_35] : memref<112x1xf32, #tpu.memory_space<vmem>>, vector<112x1xf32>
    %cst_36 = arith.constant dense<0.000000e+00> : vector<112x128xf32>
    %53 = tpu.matmul %51, %50, %cst_36 {dimension_numbers = #tpu.dot_dimension_numbers<[1], [0], [0], [1], [0, 0, 1, 1], [], []>} : vector<112x32xf32>, vector<32x128xf32>, vector<112x128xf32> -> vector<112x128xf32>
    %54 = vector.broadcast %52 : vector<112x1xf32> to vector<112x128xf32>
    %55 = arith.addf %53, %54 : vector<112x128xf32>
    %cst_37 = arith.constant 0.000000e+00 : f32
    %56 = vector.broadcast %cst_37 : f32 to vector<112x128xf32>
    %57 = arith.cmpf ogt, %55, %56 : vector<112x128xf32>
    %58 = math.exp %55 : vector<112x128xf32>
    %cst_38 = arith.constant 1.000000e+00 : f32
    %59 = vector.broadcast %cst_38 : f32 to vector<112x128xf32>
    %60 = arith.subf %58, %59 : vector<112x128xf32>
    %61 = arith.select %57, %55, %60 : vector<112x128xi1>, vector<112x128xf32>
    %c0_39 = arith.constant 0 : index
    %c0_40 = arith.constant 0 : index
    %62 = vector.load %arg8[%c0_39, %c0_40] : memref<112x112xf32, #tpu.memory_space<vmem>>, vector<112x112xf32>
    %c0_41 = arith.constant 0 : index
    %c0_42 = arith.constant 0 : index
    %63 = vector.load %arg9[%c0_41, %c0_42] : memref<112x1xf32, #tpu.memory_space<vmem>>, vector<112x1xf32>
    %cst_43 = arith.constant dense<0.000000e+00> : vector<112x128xf32>
    %64 = tpu.matmul %62, %61, %cst_43 {dimension_numbers = #tpu.dot_dimension_numbers<[1], [0], [0], [1], [0, 0, 1, 1], [], []>} : vector<112x112xf32>, vector<112x128xf32>, vector<112x128xf32> -> vector<112x128xf32>
    %65 = vector.broadcast %63 : vector<112x1xf32> to vector<112x128xf32>
    %66 = arith.addf %64, %65 : vector<112x128xf32>
    %cst_44 = arith.constant 0.000000e+00 : f32
    %67 = vector.broadcast %cst_44 : f32 to vector<112x128xf32>
    %68 = arith.cmpf ogt, %66, %67 : vector<112x128xf32>
    %69 = math.exp %66 : vector<112x128xf32>
    %cst_45 = arith.constant 1.000000e+00 : f32
    %70 = vector.broadcast %cst_45 : f32 to vector<112x128xf32>
    %71 = arith.subf %69, %70 : vector<112x128xf32>
    %72 = arith.select %68, %66, %71 : vector<112x128xi1>, vector<112x128xf32>
    %c0_46 = arith.constant 0 : index
    %c0_47 = arith.constant 0 : index
    %73 = vector.load %arg10[%c0_46, %c0_47] : memref<16x112xf32, #tpu.memory_space<vmem>>, vector<16x112xf32>
    %c0_48 = arith.constant 0 : index
    %c0_49 = arith.constant 0 : index
    %74 = vector.load %arg11[%c0_48, %c0_49] : memref<16x1xf32, #tpu.memory_space<vmem>>, vector<16x1xf32>
    %cst_50 = arith.constant dense<0.000000e+00> : vector<16x128xf32>
    %75 = tpu.matmul %73, %72, %cst_50 {dimension_numbers = #tpu.dot_dimension_numbers<[1], [0], [0], [1], [0, 0, 1, 1], [], []>} : vector<16x112xf32>, vector<112x128xf32>, vector<16x128xf32> -> vector<16x128xf32>
    %76 = vector.broadcast %74 : vector<16x1xf32> to vector<16x128xf32>
    %77 = arith.addf %75, %76 : vector<16x128xf32>
    %c0_51 = arith.constant 0 : index
    %c0_52 = arith.constant 0 : index
    %78 = vector.load %arg12[%c0_51, %c0_52] : memref<16x128xf32, #tpu.memory_space<vmem>>, vector<16x128xf32>
    tpu.vector_store %arg12[%c0_51, %c0_52], %77 {strides = array<i32>} : memref<16x128xf32, #tpu.memory_space<vmem>>, vector<16x128xf32>,
    return
  }
  func.func @transform_0(%arg0: i32) -> (i32, i32) {
    %c0_i32 = arith.constant 0 : i32
    %c0_i32_0 = arith.constant 0 : i32
    return %c0_i32, %arg0 : i32, i32
  }
  func.func @transform_1(%arg0: i32) -> (i32, i32) {
    %c0_i32 = arith.constant 0 : i32
    %c0_i32_0 = arith.constant 0 : i32
    %c0_i32_1 = arith.constant 0 : i32
    return %c0_i32, %c0_i32_0 : i32, i32
  }
  func.func @transform_2(%arg0: i32) -> (i32, i32) {
    %c0_i32 = arith.constant 0 : i32
    %c0_i32_0 = arith.constant 0 : i32
    %c0_i32_1 = arith.constant 0 : i32
    return %c0_i32, %c0_i32_0 : i32, i32
  }
  func.func @transform_3(%arg0: i32) -> (i32, i32, i32) {
    %c0_i32 = arith.constant 0 : i32
    %c0_i32_0 = arith.constant 0 : i32
    %c0_i32_1 = arith.constant 0 : i32
    %c0_i32_2 = arith.constant 0 : i32
    return %c0_i32, %c0_i32_0, %c0_i32_1 : i32, i32, i32
  }
  func.func @transform_4(%arg0: i32) -> (i32, i32, i32) {
    %c0_i32 = arith.constant 0 : i32
    %c0_i32_0 = arith.constant 0 : i32
    %c0_i32_1 = arith.constant 0 : i32
    %c0_i32_2 = arith.constant 0 : i32
    return %c0_i32, %c0_i32_0, %c0_i32_1 : i32, i32, i32
  }
  func.func @transform_5(%arg0: i32) -> (i32, i32) {
    %c0_i32 = arith.constant 0 : i32
    %c0_i32_0 = arith.constant 0 : i32
    %c0_i32_1 = arith.constant 0 : i32
    return %c0_i32, %c0_i32_0 : i32, i32
  }
  func.func @transform_6(%arg0: i32) -> (i32, i32) {
    %c0_i32 = arith.constant 0 : i32
    %c0_i32_0 = arith.constant 0 : i32
    %c0_i32_1 = arith.constant 0 : i32
    return %c0_i32, %c0_i32_0 : i32, i32
  }
  func.func @transform_7(%arg0: i32) -> (i32, i32) {
    %c0_i32 = arith.constant 0 : i32
    %c0_i32_0 = arith.constant 0 : i32
    %c0_i32_1 = arith.constant 0 : i32
    return %c0_i32, %c0_i32_0 : i32, i32
  }
  func.func @transform_8(%arg0: i32) -> (i32, i32) {
    %c0_i32 = arith.constant 0 : i32
    %c0_i32_0 = arith.constant 0 : i32
    %c0_i32_1 = arith.constant 0 : i32
    return %c0_i32, %c0_i32_0 : i32, i32
  }
  func.func @transform_9(%arg0: i32) -> (i32, i32) {
    %c0_i32 = arith.constant 0 : i32
    %c0_i32_0 = arith.constant 0 : i32
    %c0_i32_1 = arith.constant 0 : i32
    return %c0_i32, %c0_i32_0 : i32, i32
  }
  func.func @transform_10(%arg0: i32) -> (i32, i32) {
    %c0_i32 = arith.constant 0 : i32
    %c0_i32_0 = arith.constant 0 : i32
    %c0_i32_1 = arith.constant 0 : i32
    return %c0_i32, %c0_i32_0 : i32, i32
  }
  func.func @transform_11(%arg0: i32) -> (i32, i32) {
    %c0_i32 = arith.constant 0 : i32
    %c0_i32_0 = arith.constant 0 : i32
    return %c0_i32, %arg0 : i32, i32
  }
}

</mosaic_0001>

<llo_original>
// kernel: tpu_custom_call.1
$region0: #{tpu_custom_call.1}
  #allocation0 [shape = 'u32[]', space=smem, size = 0x4, offset = 0x4, fixed_abs, tag = 'smem constant byte address 0x4 - core index']
  #allocation1 [shape = 'u32[144,128]{1,0:T(1,128)}', space=vmem, size = 0x12000, scoped, tag = 'internal scratch']
  %s0 = inlined_call_operand.vmem [shape: f32[16,128], index: 0, kind: input, shape index: {}]
  %s1 = inlined_call_operand.vmem [shape: f32[32,16], index: 1, kind: input, shape index: {}]
  %s2 = inlined_call_operand.vmem [shape: f32[32,1], index: 2, kind: input, shape index: {}]
  %s3 = inlined_call_operand.vmem [shape: f32[3,32,32], index: 3, kind: input, shape index: {}]
  %s4 = inlined_call_operand.vmem [shape: f32[3,32,1], index: 4, kind: input, shape index: {}]
  %s5 = inlined_call_operand.vmem [shape: f32[112,32], index: 5, kind: input, shape index: {}]
  %s6 = inlined_call_operand.vmem [shape: f32[112,1], index: 6, kind: input, shape index: {}]
  %s7 = inlined_call_operand.vmem [shape: f32[112,112], index: 7, kind: input, shape index: {}]
  %s8 = inlined_call_operand.vmem [shape: f32[112,1], index: 8, kind: input, shape index: {}]
  %s9 = inlined_call_operand.vmem [shape: f32[16,112], index: 9, kind: input, shape index: {}]
  %s10 = inlined_call_operand.vmem [shape: f32[16,1], index: 10, kind: input, shape index: {}]
  %s11 = inlined_call_operand.hbm [shape: f32[16,128], index: 11, kind: output, shape index: {}]
  %s12 = sld [smem:[#allocation0]]
  $region54: #{tpu_custom_call.1} parent=0
    _
  %s14 = ssub.s32 1, %s12
  %s15 = scalar_select 0, %s14, %s12
  $region1: #{tpu_custom_call.1} parent=0
    #allocation2 [shape = 'u8[8192]{0}', space=vmem, size = 0x2000, scoped, tag = 'output window, operand 0, single buffered']
    #allocation3 [shape = 's32[1]{0}', space=sflag, size = 0x4, scoped, tag = 'scoped memory for tpu_custom_call.1']
    %16 = vsyncpa [#allocation3], 0
    // Predicated region
    $region2: #{tpu_custom_call.1} parent=1 // pred_check
      _
    $region3: #{tpu_custom_call.1} parent=1 // pred_check_branch
      %18 = sbr.rel (0) target = $region5
    $region4: #{tpu_custom_call.1} parent=1 // pred_region
      _
    $region5: #{tpu_custom_call.1} parent=1 // pred_fallthru
      _
    // Predicated region
    $region6: #{tpu_custom_call.1} parent=1 // pred_check
      _
    $region7: #{tpu_custom_call.1} parent=1 // pred_check_branch
      %20 = sbr.rel (0) target = $region9
    $region8: #{tpu_custom_call.1} parent=1 // pred_region
      _
    $region9: #{tpu_custom_call.1} parent=1 // pred_fallthru
      _
    // Predicated region
    $region10: #{tpu_custom_call.1} parent=1 // pred_check
      _
    $region11: #{tpu_custom_call.1} parent=1 // pred_check_branch
      %22 = sbr.rel (0) target = $region13
    $region12: #{tpu_custom_call.1} parent=1 // pred_region
      _
    $region13: #{tpu_custom_call.1} parent=1 // pred_fallthru
      _
    // Predicated region
    $region14: #{tpu_custom_call.1} parent=1 // pred_check
      _
    $region15: #{tpu_custom_call.1} parent=1 // pred_check_branch
      %24 = sbr.rel (0) target = $region17
    $region16: #{tpu_custom_call.1} parent=1 // pred_region
      _
    $region17: #{tpu_custom_call.1} parent=1 // pred_fallthru
      _
    // Predicated region
    $region18: #{tpu_custom_call.1} parent=1 // pred_check
      _
    $region19: #{tpu_custom_call.1} parent=1 // pred_check_branch
      %26 = sbr.rel (0) target = $region21
    $region20: #{tpu_custom_call.1} parent=1 // pred_region
      _
    $region21: #{tpu_custom_call.1} parent=1 // pred_fallthru
      _
    // Predicated region
    $region22: #{tpu_custom_call.1} parent=1 // pred_check
      _
    $region23: #{tpu_custom_call.1} parent=1 // pred_check_branch
      %28 = sbr.rel (0) target = $region25
    $region24: #{tpu_custom_call.1} parent=1 // pred_region
      _
    $region25: #{tpu_custom_call.1} parent=1 // pred_fallthru
      _
    // Predicated region
    $region26: #{tpu_custom_call.1} parent=1 // pred_check
      _
    $region27: #{tpu_custom_call.1} parent=1 // pred_check_branch
      %30 = sbr.rel (0) target = $region29
    $region28: #{tpu_custom_call.1} parent=1 // pred_region
      _
    $region29: #{tpu_custom_call.1} parent=1 // pred_fallthru
      _
    // Predicated region
    $region30: #{tpu_custom_call.1} parent=1 // pred_check
      _
    $region31: #{tpu_custom_call.1} parent=1 // pred_check_branch
      %32 = sbr.rel (0) target = $region33
    $region32: #{tpu_custom_call.1} parent=1 // pred_region
      _
    $region33: #{tpu_custom_call.1} parent=1 // pred_fallthru
      _
    // Predicated region
    $region34: #{tpu_custom_call.1} parent=1 // pred_check
      _
    $region35: #{tpu_custom_call.1} parent=1 // pred_check_branch
      %34 = sbr.rel (0) target = $region37
    $region36: #{tpu_custom_call.1} parent=1 // pred_region
      _
    $region37: #{tpu_custom_call.1} parent=1 // pred_fallthru
      _
    // Predicated region
    $region38: #{tpu_custom_call.1} parent=1 // pred_check
      _
    $region39: #{tpu_custom_call.1} parent=1 // pred_check_branch
      %36 = sbr.rel (0) target = $region41
    $region40: #{tpu_custom_call.1} parent=1 // pred_region
      _
    $region41: #{tpu_custom_call.1} parent=1 // pred_fallthru
      _
    // Predicated region
    $region42: #{tpu_custom_call.1} parent=1 // pred_check
      _
    $region43: #{tpu_custom_call.1} parent=1 // pred_check_branch
      %38 = sbr.rel (0) target = $region45
    $region44: #{tpu_custom_call.1} parent=1 // pred_region
      _
    $region45: #{tpu_custom_call.1} parent=1 // pred_fallthru
      _
    %v39 = vld [vmem:[%s1] sm:$0xff]
    %v40 = vld [vmem:[%s1 + $0x8] sm:$0xff]
    %v41 = vld [vmem:[%s1 + $0x10] sm:$0xff]
    %v42 = vld [vmem:[%s1 + $0x18] sm:$0xff]
    %v43 = vld [vmem:[%s0] sm:$0xff]
    %v44 = vld [vmem:[%s0 + $0x8] sm:$0xff]
    %v45 = vld [vmem:[%s2] sm:$0xff]
    %v46 = vld [vmem:[%s2 + $0x8] sm:$0xff]
    %v47 = vld [vmem:[%s2 + $0x10] sm:$0xff]
    %v48 = vld [vmem:[%s2 + $0x18] sm:$0xff]
    %50 = vset.pattern.permute.xlu0 0
    %51 = vperm.xlu0 %50, %v45
    %v52 = vpop.permute.xlu0 %51
    %55 = vset.pattern.permute.xlu0 0
    %56 = vperm.xlu0 %55, %v46
    %v57 = vpop.permute.xlu0 %56
    %60 = vset.pattern.permute.xlu0 0
    %61 = vperm.xlu0 %60, %v47
    %v62 = vpop.permute.xlu0 %61
    %65 = vset.pattern.permute.xlu0 0
    %66 = vperm.xlu0 %65, %v48
    %v67 = vpop.permute.xlu0 %66
    %vm69 = vcmask 130048
    %v71 = vsel %vm69, %v39, 0
    %v74 = vsel %vm69, %v40, 0
    %v77 = vsel %vm69, %v41, 0
    %v80 = vsel %vm69, %v42, 0
    %82 = vmatprep.subr.mxu0 0.0
    %83 = vmatpush1.msra.mxu0 %v43
    %84 = vmatprep.subr.mxu0 0.0
    %85 = vmatpush1.msra.mxu0 %v44
    %86 = vmatprep.subr.mxu0 0.0
    %87 = vmatpush1.msra.mxu0 0.0
    %88 = vmatprep.subr.mxu0 0.0
    %89 = vmatpush1.msra.mxu0 0.0
    %90 = vmatprep.subr.mxu0 0.0
    %91 = vmatpush1.msra.mxu0 0.0
    %92 = vmatprep.subr.mxu0 0.0
    %93 = vmatpush1.msra.mxu0 0.0
    %94 = vmatprep.subr.mxu0 0.0
    %95 = vmatpush1.msra.mxu0 0.0
    %96 = vmatprep.subr.mxu0 0.0
    %97 = vmatpush1.msra.mxu0 0.0
    %98 = vmatprep.subr.mxu0 0.0
    %99 = vmatpush1.msra.mxu0 0.0
    %100 = vmatprep.subr.mxu0 0.0
    %101 = vmatpush1.msra.mxu0 0.0
    %102 = vmatprep.subr.mxu0 0.0
    %103 = vmatpush1.msra.mxu0 0.0
    %104 = vmatprep.subr.mxu0 0.0
    %105 = vmatpush1.msra.mxu0 0.0
    %106 = vmatprep.subr.mxu0 0.0
    %107 = vmatpush1.msra.mxu0 0.0
    %108 = vmatprep.subr.mxu0 0.0
    %109 = vmatpush1.msra.mxu0 0.0
    %110 = vmatprep.subr.mxu0 0.0
    %111 = vmatpush1.msra.mxu0 0.0
    %112 = vmatprep.subr.mxu0 0.0
    %113 = vmatpush1.msra.mxu0 0.0
    %114 = vmatprep.subr.mxu0 0.0
    %115 = vmatpush1.msra.mxu0 0.0
    %116 = vmatprep.subr.mxu0 0.0
    %117 = vmatpush1.msra.mxu0 0.0
    %118 = vmatprep.subr.mxu0 0.0
    %119 = vmatpush1.msra.mxu0 0.0
    %120 = vmatprep.subr.mxu0 0.0
    %121 = vmatpush1.msra.mxu0 0.0
    %122 = vmatprep.subr.mxu0 0.0
    %123 = vmatpush1.msra.mxu0 0.0
    %124 = vmatprep.subr.mxu0 0.0
    %125 = vmatpush1.msra.mxu0 0.0
    %126 = vmatprep.subr.mxu0 0.0
    %127 = vmatpush1.msra.mxu0 0.0
    %128 = vmatprep.subr.mxu0 0.0
    %129 = vmatpush1.msra.mxu0 0.0
    %130 = vmatprep.subr.mxu0 0.0
    %131 = vmatpush1.msra.mxu0 0.0
    %132 = vmatprep.subr.mxu0 0.0
    %133 = vmatpush1.msra.mxu0 0.0
    %134 = vmatprep.subr.mxu0 0.0
    %135 = vmatpush1.msra.mxu0 0.0
    %136 = vmatprep.subr.mxu0 0.0
    %137 = vmatpush1.msra.mxu0 0.0
    %138 = vmatprep.subr.mxu0 0.0
    %139 = vmatpush1.msra.mxu0 0.0
    %140 = vmatprep.subr.mxu0 0.0
    %141 = vmatpush1.msra.mxu0 0.0
    %142 = vmatprep.subr.mxu0 0.0
    %143 = vmatpush1.msra.mxu0 0.0
    %144 = vmatprep.subr.mxu0 0.0
    %145 = vmatpush1.msra.mxu0 0.0
    %146 = vmatprep.mubr.f32.mxu0 0.0
    %147 = vmatmul.mubr.f32.gmra.mrb[0].mxu0 %v71
    %v148 = vpop.f32.mrb[0].mxu0
    %v149 = vadd.f32 %v52, %v148
    %v150 = vpop.f32.mrb[0].mxu0
    %151 = vmatprep.mubr.f32.mxu0 0.0
    %152 = vmatmul.mubr.f32.gmra.mrb[0].mxu0 %v74
    %v153 = vpop.f32.mrb[0].mxu0
    %v154 = vadd.f32 %v57, %v153
    %v155 = vpop.f32.mrb[0].mxu0
    %156 = vmatprep.mubr.f32.mxu0 0.0
    %157 = vmatmul.mubr.f32.gmra.mrb[0].mxu0 %v77
    %v158 = vpop.f32.mrb[0].mxu0
    %v159 = vadd.f32 %v62, %v158
    %v160 = vpop.f32.mrb[0].mxu0
    %161 = vmatprep.mubr.f32.mxu0 0.0
    %162 = vmatmul.mubr.f32.gmra.mrb[0].mxu0 %v80
    %v163 = vpop.f32.mrb[0].mxu0
    %v164 = vadd.f32 %v67, %v163
    %v165 = vpop.f32.mrb[0].mxu0
    %166 = vdwg.mxu0
    %vm167 = vcmp.gt.f32.partialorder %v149, 0.0
    %vm168 = vcmp.gt.f32.partialorder %v154, 0.0
    %vm169 = vcmp.gt.f32.partialorder %v159, 0.0
    %vm170 = vcmp.gt.f32.partialorder %v164, 0.0
    %v171 = vmul.f32 %v149, 1.442695
    %v172 = vpow.pop %v171
    %v173 = vmul.f32 %v154, 1.442695
    %v174 = vpow.pop %v173
    %v175 = vmul.f32 %v159, 1.442695
    %v176 = vpow.pop %v175
    %v177 = vmul.f32 %v164, 1.442695
    %v178 = vpow.pop %v177
    %v179 = vsub.f32 %v172, 1.0
    %v180 = vsub.f32 %v174, 1.0
    %v181 = vsub.f32 %v176, 1.0
    %v182 = vsub.f32 %v178, 1.0
    %v183 = vsel %vm167, %v149, %v179
    %v184 = vsel %vm168, %v154, %v180
    %v185 = vsel %vm169, %v159, %v181
    %v186 = vsel %vm170, %v164, %v182
    %v187 = vld [vmem:[%s3] sm:$0xff]
    %v188 = vld [vmem:[%s3 + $0x8] sm:$0xff]
    %v189 = vld [vmem:[%s3 + $0x10] sm:$0xff]
    %v190 = vld [vmem:[%s3 + $0x18] sm:$0xff]
    %v191 = vld [vmem:[%s4] sm:$0xff]
    %v192 = vld [vmem:[%s4 + $0x8] sm:$0xff]
    %v193 = vld [vmem:[%s4 + $0x10] sm:$0xff]
    %v194 = vld [vmem:[%s4 + $0x18] sm:$0xff]
    %196 = vset.pattern.permute.xlu0 0
    %197 = vperm.xlu0 %196, %v191
    %v198 = vpop.permute.xlu0 %197
    %201 = vset.pattern.permute.xlu0 0
    %202 = vperm.xlu0 %201, %v192
    %v203 = vpop.permute.xlu0 %202
    %206 = vset.pattern.permute.xlu0 0
    %207 = vperm.xlu0 %206, %v193
    %v208 = vpop.permute.xlu0 %207
    %211 = vset.pattern.permute.xlu0 0
    %212 = vperm.xlu0 %211, %v194
    %v213 = vpop.permute.xlu0 %212
    %vm215 = vcmask 261120
    %v217 = vsel %vm215, %v187, 0
    %v220 = vsel %vm215, %v188, 0
    %v223 = vsel %vm215, %v189, 0
    %v226 = vsel %vm215, %v190, 0
    %228 = vmatprep.subr.mxu0 0.0
    %229 = vmatpush1.msra.mxu0 %v183
    %230 = vmatprep.subr.mxu0 0.0
    %231 = vmatpush1.msra.mxu0 %v184
    %232 = vmatprep.subr.mxu0 0.0
    %233 = vmatpush1.msra.mxu0 %v185
    %234 = vmatprep.subr.mxu0 0.0
    %235 = vmatpush1.msra.mxu0 %v186
    %236 = vmatprep.subr.mxu0 0.0
    %237 = vmatpush1.msra.mxu0 0.0
    %238 = vmatprep.subr.mxu0 0.0
    %239 = vmatpush1.msra.mxu0 0.0
    %240 = vmatprep.subr.mxu0 0.0
    %241 = vmatpush1.msra.mxu0 0.0
    %242 = vmatprep.subr.mxu0 0.0
    %243 = vmatpush1.msra.mxu0 0.0
    %244 = vmatprep.subr.mxu0 0.0
    %245 = vmatpush1.msra.mxu0 0.0
    %246 = vmatprep.subr.mxu0 0.0
    %247 = vmatpush1.msra.mxu0 0.0
    %248 = vmatprep.subr.mxu0 0.0
    %249 = vmatpush1.msra.mxu0 0.0
    %250 = vmatprep.subr.mxu0 0.0
    %251 = vmatpush1.msra.mxu0 0.0
    %252 = vmatprep.subr.mxu0 0.0
    %253 = vmatpush1.msra.mxu0 0.0
    %254 = vmatprep.subr.mxu0 0.0
    %255 = vmatpush1.msra.mxu0 0.0
    %256 = vmatprep.subr.mxu0 0.0
    %257 = vmatpush1.msra.mxu0 0.0
    %258 = vmatprep.subr.mxu0 0.0
    %259 = vmatpush1.msra.mxu0 0.0
    %260 = vmatprep.subr.mxu0 0.0
    %261 = vmatpush1.msra.mxu0 0.0
    %262 = vmatprep.subr.mxu0 0.0
    %263 = vmatpush1.msra.mxu0 0.0
    %264 = vmatprep.subr.mxu0 0.0
    %265 = vmatpush1.msra.mxu0 0.0
    %266 = vmatprep.subr.mxu0 0.0
    %267 = vmatpush1.msra.mxu0 0.0
    %268 = vmatprep.subr.mxu0 0.0
    %269 = vmatpush1.msra.mxu0 0.0
    %270 = vmatprep.subr.mxu0 0.0
    %271 = vmatpush1.msra.mxu0 0.0
    %272 = vmatprep.subr.mxu0 0.0
    %273 = vmatpush1.msra.mxu0 0.0
    %274 = vmatprep.subr.mxu0 0.0
    %275 = vmatpush1.msra.mxu0 0.0
    %276 = vmatprep.subr.mxu0 0.0
    %277 = vmatpush1.msra.mxu0 0.0
    %278 = vmatprep.subr.mxu0 0.0
    %279 = vmatpush1.msra.mxu0 0.0
    %280 = vmatprep.subr.mxu0 0.0
    %281 = vmatpush1.msra.mxu0 0.0
    %282 = vmatprep.subr.mxu0 0.0
    %283 = vmatpush1.msra.mxu0 0.0
    %284 = vmatprep.subr.mxu0 0.0
    %285 = vmatpush1.msra.mxu0 0.0
    %286 = vmatprep.subr.mxu0 0.0
    %287 = vmatpush1.msra.mxu0 0.0
    %288 = vmatprep.subr.mxu0 0.0
    %289 = vmatpush1.msra.mxu0 0.0
    %290 = vmatprep.subr.mxu0 0.0
    %291 = vmatpush1.msra.mxu0 0.0
    %292 = vmatprep.mubr.f32.mxu0 0.0
    %293 = vmatmul.mubr.f32.gmra.mrb[0].mxu0 %v217
    %v294 = vpop.f32.mrb[0].mxu0
    %v295 = vadd.f32 %v198, %v294
    %v296 = vpop.f32.mrb[0].mxu0
    %297 = vmatprep.mubr.f32.mxu0 0.0
    %298 = vmatmul.mubr.f32.gmra.mrb[0].mxu0 %v220
    %v299 = vpop.f32.mrb[0].mxu0
    %v300 = vadd.f32 %v203, %v299
    %v301 = vpop.f32.mrb[0].mxu0
    %302 = vmatprep.mubr.f32.mxu0 0.0
    %303 = vmatmul.mubr.f32.gmra.mrb[0].mxu0 %v223
    %v304 = vpop.f32.mrb[0].mxu0
    %v305 = vadd.f32 %v208, %v304
    %v306 = vpop.f32.mrb[0].mxu0
    %307 = vmatprep.mubr.f32.mxu0 0.0
    %308 = vmatmul.mubr.f32.gmra.mrb[0].mxu0 %v226
    %v309 = vpop.f32.mrb[0].mxu0
    %v310 = vadd.f32 %v213, %v309
    %v311 = vpop.f32.mrb[0].mxu0
    %312 = vdwg.mxu0
    %vm313 = vcmp.gt.f32.partialorder %v295, 0.0
    %vm314 = vcmp.gt.f32.partialorder %v300, 0.0
    %vm315 = vcmp.gt.f32.partialorder %v305, 0.0
    %vm316 = vcmp.gt.f32.partialorder %v310, 0.0
    %v317 = vmul.f32 %v295, 1.442695
    %v318 = vpow.pop %v317
    %v319 = vmul.f32 %v300, 1.442695
    %v320 = vpow.pop %v319
    %v321 = vmul.f32 %v305, 1.442695
    %v322 = vpow.pop %v321
    %v323 = vmul.f32 %v310, 1.442695
    %v324 = vpow.pop %v323
    %v325 = vsub.f32 %v318, 1.0
    %v326 = vsub.f32 %v320, 1.0
    %v327 = vsub.f32 %v322, 1.0
    %v328 = vsub.f32 %v324, 1.0
    %v329 = vsel %vm313, %v295, %v325
    %v330 = vsel %vm314, %v300, %v326
    %v331 = vsel %vm315, %v305, %v327
    %v332 = vsel %vm316, %v310, %v328
    %s333 = scalar_lea.vmem %s3, 32
    %v334 = vld [vmem:[%s333] sm:$0xff]
    %v335 = vld [vmem:[%s333 + $0x8] sm:$0xff]
    %v336 = vld [vmem:[%s333 + $0x10] sm:$0xff]
    %v337 = vld [vmem:[%s333 + $0x18] sm:$0xff]
    %s338 = scalar_lea.vmem %s4, 32
    %v339 = vld [vmem:[%s338] sm:$0xff]
    %v340 = vld [vmem:[%s338 + $0x8] sm:$0xff]
    %v341 = vld [vmem:[%s338 + $0x10] sm:$0xff]
    %v342 = vld [vmem:[%s338 + $0x18] sm:$0xff]
    %344 = vset.pattern.permute.xlu0 0
    %345 = vperm.xlu0 %344, %v339
    %v346 = vpop.permute.xlu0 %345
    %349 = vset.pattern.permute.xlu0 0
    %350 = vperm.xlu0 %349, %v340
    %v351 = vpop.permute.xlu0 %350
    %354 = vset.pattern.permute.xlu0 0
    %355 = vperm.xlu0 %354, %v341
    %v356 = vpop.permute.xlu0 %355
    %359 = vset.pattern.permute.xlu0 0
    %360 = vperm.xlu0 %359, %v342
    %v361 = vpop.permute.xlu0 %360
    %v364 = vsel %vm215, %v334, 0
    %v367 = vsel %vm215, %v335, 0
    %v370 = vsel %vm215, %v336, 0
    %v373 = vsel %vm215, %v337, 0
    %375 = vmatprep.subr.mxu0 0.0
    %376 = vmatpush1.msra.mxu0 %v329
    %377 = vmatprep.subr.mxu0 0.0
    %378 = vmatpush1.msra.mxu0 %v330
    %379 = vmatprep.subr.mxu0 0.0
    %380 = vmatpush1.msra.mxu0 %v331
    %381 = vmatprep.subr.mxu0 0.0
    %382 = vmatpush1.msra.mxu0 %v332
    %383 = vmatprep.subr.mxu0 0.0
    %384 = vmatpush1.msra.mxu0 0.0
    %385 = vmatprep.subr.mxu0 0.0
    %386 = vmatpush1.msra.mxu0 0.0
    %387 = vmatprep.subr.mxu0 0.0
    %388 = vmatpush1.msra.mxu0 0.0
    %389 = vmatprep.subr.mxu0 0.0
    %390 = vmatpush1.msra.mxu0 0.0
    %391 = vmatprep.subr.mxu0 0.0
    %392 = vmatpush1.msra.mxu0 0.0
    %393 = vmatprep.subr.mxu0 0.0
    %394 = vmatpush1.msra.mxu0 0.0
    %395 = vmatprep.subr.mxu0 0.0
    %396 = vmatpush1.msra.mxu0 0.0
    %397 = vmatprep.subr.mxu0 0.0
    %398 = vmatpush1.msra.mxu0 0.0
    %399 = vmatprep.subr.mxu0 0.0
    %400 = vmatpush1.msra.mxu0 0.0
    %401 = vmatprep.subr.mxu0 0.0
    %402 = vmatpush1.msra.mxu0 0.0
    %403 = vmatprep.subr.mxu0 0.0
    %404 = vmatpush1.msra.mxu0 0.0
    %405 = vmatprep.subr.mxu0 0.0
    %406 = vmatpush1.msra.mxu0 0.0
    %407 = vmatprep.subr.mxu0 0.0
    %408 = vmatpush1.msra.mxu0 0.0
    %409 = vmatprep.subr.mxu0 0.0
    %410 = vmatpush1.msra.mxu0 0.0
    %411 = vmatprep.subr.mxu0 0.0
    %412 = vmatpush1.msra.mxu0 0.0
    %413 = vmatprep.subr.mxu0 0.0
    %414 = vmatpush1.msra.mxu0 0.0
    %415 = vmatprep.subr.mxu0 0.0
    %416 = vmatpush1.msra.mxu0 0.0
    %417 = vmatprep.subr.mxu0 0.0
    %418 = vmatpush1.msra.mxu0 0.0
    %419 = vmatprep.subr.mxu0 0.0
    %420 = vmatpush1.msra.mxu0 0.0
    %421 = vmatprep.subr.mxu0 0.0
    %422 = vmatpush1.msra.mxu0 0.0
    %423 = vmatprep.subr.mxu0 0.0
    %424 = vmatpush1.msra.mxu0 0.0
    %425 = vmatprep.subr.mxu0 0.0
    %426 = vmatpush1.msra.mxu0 0.0
    %427 = vmatprep.subr.mxu0 0.0
    %428 = vmatpush1.msra.mxu0 0.0
    %429 = vmatprep.subr.mxu0 0.0
    %430 = vmatpush1.msra.mxu0 0.0
    %431 = vmatprep.subr.mxu0 0.0
    %432 = vmatpush1.msra.mxu0 0.0
    %433 = vmatprep.subr.mxu0 0.0
    %434 = vmatpush1.msra.mxu0 0.0
    %435 = vmatprep.subr.mxu0 0.0
    %436 = vmatpush1.msra.mxu0 0.0
    %437 = vmatprep.subr.mxu0 0.0
    %438 = vmatpush1.msra.mxu0 0.0
    %439 = vmatprep.mubr.f32.mxu0 0.0
    %440 = vmatmul.mubr.f32.gmra.mrb[0].mxu0 %v364
    %v441 = vpop.f32.mrb[0].mxu0
    %v442 = vadd.f32 %v346, %v441
    %v443 = vpop.f32.mrb[0].mxu0
    %444 = vmatprep.mubr.f32.mxu0 0.0
    %445 = vmatmul.mubr.f32.gmra.mrb[0].mxu0 %v367
    %v446 = vpop.f32.mrb[0].mxu0
    %v447 = vadd.f32 %v351, %v446
    %v448 = vpop.f32.mrb[0].mxu0
    %449 = vmatprep.mubr.f32.mxu0 0.0
    %450 = vmatmul.mubr.f32.gmra.mrb[0].mxu0 %v370
    %v451 = vpop.f32.mrb[0].mxu0
    %v452 = vadd.f32 %v356, %v451
    %v453 = vpop.f32.mrb[0].mxu0
    %454 = vmatprep.mubr.f32.mxu0 0.0
    %455 = vmatmul.mubr.f32.gmra.mrb[0].mxu0 %v373
    %v456 = vpop.f32.mrb[0].mxu0
    %v457 = vadd.f32 %v361, %v456
    %v458 = vpop.f32.mrb[0].mxu0
    %459 = vdwg.mxu0
    %vm460 = vcmp.gt.f32.partialorder %v442, 0.0
    %vm461 = vcmp.gt.f32.partialorder %v447, 0.0
    %vm462 = vcmp.gt.f32.partialorder %v452, 0.0
    %vm463 = vcmp.gt.f32.partialorder %v457, 0.0
    %v464 = vmul.f32 %v442, 1.442695
    %v465 = vpow.pop %v464
    %v466 = vmul.f32 %v447, 1.442695
    %v467 = vpow.pop %v466
    %v468 = vmul.f32 %v452, 1.442695
    %v469 = vpow.pop %v468
    %v470 = vmul.f32 %v457, 1.442695
    %v471 = vpow.pop %v470
    %v472 = vsub.f32 %v465, 1.0
    %v473 = vsub.f32 %v467, 1.0
    %v474 = vsub.f32 %v469, 1.0
    %v475 = vsub.f32 %v471, 1.0
    %v476 = vsel %vm460, %v442, %v472
    %v477 = vsel %vm461, %v447, %v473
    %v478 = vsel %vm462, %v452, %v474
    %v479 = vsel %vm463, %v457, %v475
    %s480 = scalar_lea.vmem %s3, 64
    %v481 = vld [vmem:[%s480] sm:$0xff]
    %v482 = vld [vmem:[%s480 + $0x8] sm:$0xff]
    %v483 = vld [vmem:[%s480 + $0x10] sm:$0xff]
    %v484 = vld [vmem:[%s480 + $0x18] sm:$0xff]
    %s485 = scalar_lea.vmem %s4, 64
    %v486 = vld [vmem:[%s485] sm:$0xff]
    %v487 = vld [vmem:[%s485 + $0x8] sm:$0xff]
    %v488 = vld [vmem:[%s485 + $0x10] sm:$0xff]
    %v489 = vld [vmem:[%s485 + $0x18] sm:$0xff]
    %491 = vset.pattern.permute.xlu0 0
    %492 = vperm.xlu0 %491, %v486
    %v493 = vpop.permute.xlu0 %492
    %496 = vset.pattern.permute.xlu0 0
    %497 = vperm.xlu0 %496, %v487
    %v498 = vpop.permute.xlu0 %497
    %501 = vset.pattern.permute.xlu0 0
    %502 = vperm.xlu0 %501, %v488
    %v503 = vpop.permute.xlu0 %502
    %506 = vset.pattern.permute.xlu0 0
    %507 = vperm.xlu0 %506, %v489
    %v508 = vpop.permute.xlu0 %507
    %v511 = vsel %vm215, %v481, 0
    %v514 = vsel %vm215, %v482, 0
    %v517 = vsel %vm215, %v483, 0
    %v520 = vsel %vm215, %v484, 0
    %522 = vmatprep.subr.mxu0 0.0
    %523 = vmatpush1.msra.mxu0 %v476
    %524 = vmatprep.subr.mxu0 0.0
    %525 = vmatpush1.msra.mxu0 %v477
    %526 = vmatprep.subr.mxu0 0.0
    %527 = vmatpush1.msra.mxu0 %v478
    %528 = vmatprep.subr.mxu0 0.0
    %529 = vmatpush1.msra.mxu0 %v479
    %530 = vmatprep.subr.mxu0 0.0
    %531 = vmatpush1.msra.mxu0 0.0
    %532 = vmatprep.subr.mxu0 0.0
    %533 = vmatpush1.msra.mxu0 0.0
    %534 = vmatprep.subr.mxu0 0.0
    %535 = vmatpush1.msra.mxu0 0.0
    %536 = vmatprep.subr.mxu0 0.0
    %537 = vmatpush1.msra.mxu0 0.0
    %538 = vmatprep.subr.mxu0 0.0
    %539 = vmatpush1.msra.mxu0 0.0
    %540 = vmatprep.subr.mxu0 0.0
    %541 = vmatpush1.msra.mxu0 0.0
    %542 = vmatprep.subr.mxu0 0.0
    %543 = vmatpush1.msra.mxu0 0.0
    %544 = vmatprep.subr.mxu0 0.0
    %545 = vmatpush1.msra.mxu0 0.0
    %546 = vmatprep.subr.mxu0 0.0
    %547 = vmatpush1.msra.mxu0 0.0
    %548 = vmatprep.subr.mxu0 0.0
    %549 = vmatpush1.msra.mxu0 0.0
    %550 = vmatprep.subr.mxu0 0.0
    %551 = vmatpush1.msra.mxu0 0.0
    %552 = vmatprep.subr.mxu0 0.0
    %553 = vmatpush1.msra.mxu0 0.0
    %554 = vmatprep.subr.mxu0 0.0
    %555 = vmatpush1.msra.mxu0 0.0
    %556 = vmatprep.subr.mxu0 0.0
    %557 = vmatpush1.msra.mxu0 0.0
    %558 = vmatprep.subr.mxu0 0.0
    %559 = vmatpush1.msra.mxu0 0.0
    %560 = vmatprep.subr.mxu0 0.0
    %561 = vmatpush1.msra.mxu0 0.0
    %562 = vmatprep.subr.mxu0 0.0
    %563 = vmatpush1.msra.mxu0 0.0
    %564 = vmatprep.subr.mxu0 0.0
    %565 = vmatpush1.msra.mxu0 0.0
    %566 = vmatprep.subr.mxu0 0.0
    %567 = vmatpush1.msra.mxu0 0.0
    %568 = vmatprep.subr.mxu0 0.0
    %569 = vmatpush1.msra.mxu0 0.0
    %570 = vmatprep.subr.mxu0 0.0
    %571 = vmatpush1.msra.mxu0 0.0
    %572 = vmatprep.subr.mxu0 0.0
    %573 = vmatpush1.msra.mxu0 0.0
    %574 = vmatprep.subr.mxu0 0.0
    %575 = vmatpush1.msra.mxu0 0.0
    %576 = vmatprep.subr.mxu0 0.0
    %577 = vmatpush1.msra.mxu0 0.0
    %578 = vmatprep.subr.mxu0 0.0
    %579 = vmatpush1.msra.mxu0 0.0
    %580 = vmatprep.subr.mxu0 0.0
    %581 = vmatpush1.msra.mxu0 0.0
    %582 = vmatprep.subr.mxu0 0.0
    %583 = vmatpush1.msra.mxu0 0.0
    %584 = vmatprep.subr.mxu0 0.0
    %585 = vmatpush1.msra.mxu0 0.0
    %586 = vmatprep.mubr.f32.mxu0 0.0
    %587 = vmatmul.mubr.f32.gmra.mrb[0].mxu0 %v511
    %v588 = vpop.f32.mrb[0].mxu0
    %v589 = vadd.f32 %v493, %v588
    %v590 = vpop.f32.mrb[0].mxu0
    %591 = vmatprep.mubr.f32.mxu0 0.0
    %592 = vmatmul.mubr.f32.gmra.mrb[0].mxu0 %v514
    %v593 = vpop.f32.mrb[0].mxu0
    %v594 = vadd.f32 %v498, %v593
    %v595 = vpop.f32.mrb[0].mxu0
    %596 = vmatprep.mubr.f32.mxu0 0.0
    %597 = vmatmul.mubr.f32.gmra.mrb[0].mxu0 %v517
    %v598 = vpop.f32.mrb[0].mxu0
    %v599 = vadd.f32 %v503, %v598
    %v600 = vpop.f32.mrb[0].mxu0
    %601 = vmatprep.mubr.f32.mxu0 0.0
    %602 = vmatmul.mubr.f32.gmra.mrb[0].mxu0 %v520
    %v603 = vpop.f32.mrb[0].mxu0
    %v604 = vadd.f32 %v508, %v603
    %v605 = vpop.f32.mrb[0].mxu0
    %606 = vdwg.mxu0
    %vm607 = vcmp.gt.f32.partialorder %v589, 0.0
    %vm608 = vcmp.gt.f32.partialorder %v594, 0.0
    %vm609 = vcmp.gt.f32.partialorder %v599, 0.0
    %vm610 = vcmp.gt.f32.partialorder %v604, 0.0
    %v611 = vmul.f32 %v589, 1.442695
    %v612 = vpow.pop %v611
    %v613 = vmul.f32 %v594, 1.442695
    %v614 = vpow.pop %v613
    %v615 = vmul.f32 %v599, 1.442695
    %v616 = vpow.pop %v615
    %v617 = vmul.f32 %v604, 1.442695
    %v618 = vpow.pop %v617
    %v619 = vsub.f32 %v612, 1.0
    %v620 = vsub.f32 %v614, 1.0
    %v621 = vsub.f32 %v616, 1.0
    %v622 = vsub.f32 %v618, 1.0
    %v623 = vsel %vm607, %v589, %v619
    %v624 = vsel %vm608, %v594, %v620
    %v625 = vsel %vm609, %v599, %v621
    %v626 = vsel %vm610, %v604, %v622
    %v627 = vld [vmem:[%s5] sm:$0xff]
    %v628 = vld [vmem:[%s5 + $0x8] sm:$0xff]
    %v629 = vld [vmem:[%s5 + $0x10] sm:$0xff]
    %v630 = vld [vmem:[%s5 + $0x18] sm:$0xff]
    %v631 = vld [vmem:[%s5 + $0x20] sm:$0xff]
    %v632 = vld [vmem:[%s5 + $0x28] sm:$0xff]
    %v633 = vld [vmem:[%s5 + $0x30] sm:$0xff]
    %v634 = vld [vmem:[%s5 + $0x38] sm:$0xff]
    %v635 = vld [vmem:[%s5 + $0x40] sm:$0xff]
    %v636 = vld [vmem:[%s5 + $0x48] sm:$0xff]
    %v637 = vld [vmem:[%s5 + $0x50] sm:$0xff]
    %v638 = vld [vmem:[%s5 + $0x58] sm:$0xff]
    %v639 = vld [vmem:[%s5 + $0x60] sm:$0xff]
    %v640 = vld [vmem:[%s5 + $0x68] sm:$0xff]
    %v641 = vld [vmem:[%s6] sm:$0xff]
    %v642 = vld [vmem:[%s6 + $0x8] sm:$0xff]
    %v643 = vld [vmem:[%s6 + $0x10] sm:$0xff]
    %v644 = vld [vmem:[%s6 + $0x18] sm:$0xff]
    %v645 = vld [vmem:[%s6 + $0x20] sm:$0xff]
    %v646 = vld [vmem:[%s6 + $0x28] sm:$0xff]
    %v647 = vld [vmem:[%s6 + $0x30] sm:$0xff]
    %v648 = vld [vmem:[%s6 + $0x38] sm:$0xff]
    %v649 = vld [vmem:[%s6 + $0x40] sm:$0xff]
    %v650 = vld [vmem:[%s6 + $0x48] sm:$0xff]
    %v651 = vld [vmem:[%s6 + $0x50] sm:$0xff]
    %v652 = vld [vmem:[%s6 + $0x58] sm:$0xff]
    %v653 = vld [vmem:[%s6 + $0x60] sm:$0xff]
    %v654 = vld [vmem:[%s6 + $0x68] sm:$0xff]
    %656 = vset.pattern.permute.xlu0 0
    %657 = vperm.xlu0 %656, %v641
    %v658 = vpop.permute.xlu0 %657
    %661 = vset.pattern.permute.xlu0 0
    %662 = vperm.xlu0 %661, %v642
    %v663 = vpop.permute.xlu0 %662
    %666 = vset.pattern.permute.xlu0 0
    %667 = vperm.xlu0 %666, %v643
    %v668 = vpop.permute.xlu0 %667
    %671 = vset.pattern.permute.xlu0 0
    %672 = vperm.xlu0 %671, %v644
    %v673 = vpop.permute.xlu0 %672
    %676 = vset.pattern.permute.xlu0 0
    %677 = vperm.xlu0 %676, %v645
    %v678 = vpop.permute.xlu0 %677
    %681 = vset.pattern.permute.xlu0 0
    %682 = vperm.xlu0 %681, %v646
    %v683 = vpop.permute.xlu0 %682
    %686 = vset.pattern.permute.xlu0 0
    %687 = vperm.xlu0 %686, %v647
    %v688 = vpop.permute.xlu0 %687
    %691 = vset.pattern.permute.xlu0 0
    %692 = vperm.xlu0 %691, %v648
    %v693 = vpop.permute.xlu0 %692
    %696 = vset.pattern.permute.xlu0 0
    %697 = vperm.xlu0 %696, %v649
    %v698 = vpop.permute.xlu0 %697
    %701 = vset.pattern.permute.xlu0 0
    %702 = vperm.xlu0 %701, %v650
    %v703 = vpop.permute.xlu0 %702
    %706 = vset.pattern.permute.xlu0 0
    %707 = vperm.xlu0 %706, %v651
    %v708 = vpop.permute.xlu0 %707
    %711 = vset.pattern.permute.xlu0 0
    %712 = vperm.xlu0 %711, %v652
    %v713 = vpop.permute.xlu0 %712
    %716 = vset.pattern.permute.xlu0 0
    %717 = vperm.xlu0 %716, %v653
    %v718 = vpop.permute.xlu0 %717
    %721 = vset.pattern.permute.xlu0 0
    %722 = vperm.xlu0 %721, %v654
    %v723 = vpop.permute.xlu0 %722
    %v726 = vsel %vm215, %v627, 0
    %v729 = vsel %vm215, %v628, 0
    %v732 = vsel %vm215, %v629, 0
    %v735 = vsel %vm215, %v630, 0
    %v738 = vsel %vm215, %v631, 0
    %v741 = vsel %vm215, %v632, 0
    %v744 = vsel %vm215, %v633, 0
    %v747 = vsel %vm215, %v634, 0
    %v750 = vsel %vm215, %v635, 0
    %v753 = vsel %vm215, %v636, 0
    %v756 = vsel %vm215, %v637, 0
    %v759 = vsel %vm215, %v638, 0
    %v762 = vsel %vm215, %v639, 0
    %v765 = vsel %vm215, %v640, 0
    %767 = vmatprep.subr.mxu0 0.0
    %768 = vmatpush1.msra.mxu0 %v623
    %769 = vmatprep.subr.mxu0 0.0
    %770 = vmatpush1.msra.mxu0 %v624
    %771 = vmatprep.subr.mxu0 0.0
    %772 = vmatpush1.msra.mxu0 %v625
    %773 = vmatprep.subr.mxu0 0.0
    %774 = vmatpush1.msra.mxu0 %v626
    %775 = vmatprep.subr.mxu0 0.0
    %776 = vmatpush1.msra.mxu0 0.0
    %777 = vmatprep.subr.mxu0 0.0
    %778 = vmatpush1.msra.mxu0 0.0
    %779 = vmatprep.subr.mxu0 0.0
    %780 = vmatpush1.msra.mxu0 0.0
    %781 = vmatprep.subr.mxu0 0.0
    %782 = vmatpush1.msra.mxu0 0.0
    %783 = vmatprep.subr.mxu0 0.0
    %784 = vmatpush1.msra.mxu0 0.0
    %785 = vmatprep.subr.mxu0 0.0
    %786 = vmatpush1.msra.mxu0 0.0
    %787 = vmatprep.subr.mxu0 0.0
    %788 = vmatpush1.msra.mxu0 0.0
    %789 = vmatprep.subr.mxu0 0.0
    %790 = vmatpush1.msra.mxu0 0.0
    %791 = vmatprep.subr.mxu0 0.0
    %792 = vmatpush1.msra.mxu0 0.0
    %793 = vmatprep.subr.mxu0 0.0
    %794 = vmatpush1.msra.mxu0 0.0
    %795 = vmatprep.subr.mxu0 0.0
    %796 = vmatpush1.msra.mxu0 0.0
    %797 = vmatprep.subr.mxu0 0.0
    %798 = vmatpush1.msra.mxu0 0.0
    %799 = vmatprep.subr.mxu0 0.0
    %800 = vmatpush1.msra.mxu0 0.0
    %801 = vmatprep.subr.mxu0 0.0
    %802 = vmatpush1.msra.mxu0 0.0
    %803 = vmatprep.subr.mxu0 0.0
    %804 = vmatpush1.msra.mxu0 0.0
    %805 = vmatprep.subr.mxu0 0.0
    %806 = vmatpush1.msra.mxu0 0.0
    %807 = vmatprep.subr.mxu0 0.0
    %808 = vmatpush1.msra.mxu0 0.0
    %809 = vmatprep.subr.mxu0 0.0
    %810 = vmatpush1.msra.mxu0 0.0
    %811 = vmatprep.subr.mxu0 0.0
    %812 = vmatpush1.msra.mxu0 0.0
    %813 = vmatprep.subr.mxu0 0.0
    %814 = vmatpush1.msra.mxu0 0.0
    %815 = vmatprep.subr.mxu0 0.0
    %816 = vmatpush1.msra.mxu0 0.0
    %817 = vmatprep.subr.mxu0 0.0
    %818 = vmatpush1.msra.mxu0 0.0
    %819 = vmatprep.subr.mxu0 0.0
    %820 = vmatpush1.msra.mxu0 0.0
    %821 = vmatprep.subr.mxu0 0.0
    %822 = vmatpush1.msra.mxu0 0.0
    %823 = vmatprep.subr.mxu0 0.0
    %824 = vmatpush1.msra.mxu0 0.0
    %825 = vmatprep.subr.mxu0 0.0
    %826 = vmatpush1.msra.mxu0 0.0
    %827 = vmatprep.subr.mxu0 0.0
    %828 = vmatpush1.msra.mxu0 0.0
    %829 = vmatprep.subr.mxu0 0.0
    %830 = vmatpush1.msra.mxu0 0.0
    %831 = vmatprep.mubr.f32.mxu0 0.0
    %832 = vmatmul.mubr.f32.gmra.mrb[0].mxu0 %v726
    %v833 = vpop.f32.mrb[0].mxu0
    %v834 = vadd.f32 %v658, %v833
    %v835 = vpop.f32.mrb[0].mxu0
    %836 = vmatprep.mubr.f32.mxu0 0.0
    %837 = vmatmul.mubr.f32.gmra.mrb[0].mxu0 %v729
    %v838 = vpop.f32.mrb[0].mxu0
    %v839 = vadd.f32 %v663, %v838
    %v840 = vpop.f32.mrb[0].mxu0
    %841 = vmatprep.mubr.f32.mxu0 0.0
    %842 = vmatmul.mubr.f32.gmra.mrb[0].mxu0 %v732
    %v843 = vpop.f32.mrb[0].mxu0
    %v844 = vadd.f32 %v668, %v843
    %v845 = vpop.f32.mrb[0].mxu0
    %846 = vmatprep.mubr.f32.mxu0 0.0
    %847 = vmatmul.mubr.f32.gmra.mrb[0].mxu0 %v735
    %v848 = vpop.f32.mrb[0].mxu0
    %v849 = vadd.f32 %v673, %v848
    %v850 = vpop.f32.mrb[0].mxu0
    %851 = vmatprep.mubr.f32.mxu0 0.0
    %852 = vmatmul.mubr.f32.gmra.mrb[0].mxu0 %v738
    %v853 = vpop.f32.mrb[0].mxu0
    %v854 = vadd.f32 %v678, %v853
    %v855 = vpop.f32.mrb[0].mxu0
    %856 = vmatprep.mubr.f32.mxu0 0.0
    %857 = vmatmul.mubr.f32.gmra.mrb[0].mxu0 %v741
    %v858 = vpop.f32.mrb[0].mxu0
    %v859 = vadd.f32 %v683, %v858
    %v860 = vpop.f32.mrb[0].mxu0
    %861 = vmatprep.mubr.f32.mxu0 0.0
    %862 = vmatmul.mubr.f32.gmra.mrb[0].mxu0 %v744
    %v863 = vpop.f32.mrb[0].mxu0
    %v864 = vadd.f32 %v688, %v863
    %v865 = vpop.f32.mrb[0].mxu0
    %866 = vmatprep.mubr.f32.mxu0 0.0
    %867 = vmatmul.mubr.f32.gmra.mrb[0].mxu0 %v747
    %v868 = vpop.f32.mrb[0].mxu0
    %v869 = vadd.f32 %v693, %v868
    %v870 = vpop.f32.mrb[0].mxu0
    %871 = vmatprep.mubr.f32.mxu0 0.0
    %872 = vmatmul.mubr.f32.gmra.mrb[0].mxu0 %v750
    %v873 = vpop.f32.mrb[0].mxu0
    %v874 = vadd.f32 %v698, %v873
    %v875 = vpop.f32.mrb[0].mxu0
    %876 = vmatprep.mubr.f32.mxu0 0.0
    %877 = vmatmul.mubr.f32.gmra.mrb[0].mxu0 %v753
    %v878 = vpop.f32.mrb[0].mxu0
    %v879 = vadd.f32 %v703, %v878
    %v880 = vpop.f32.mrb[0].mxu0
    %881 = vmatprep.mubr.f32.mxu0 0.0
    %882 = vmatmul.mubr.f32.gmra.mrb[0].mxu0 %v756
    %v883 = vpop.f32.mrb[0].mxu0
    %v884 = vadd.f32 %v708, %v883
    %v885 = vpop.f32.mrb[0].mxu0
    %886 = vmatprep.mubr.f32.mxu0 0.0
    %887 = vmatmul.mubr.f32.gmra.mrb[0].mxu0 %v759
    %v888 = vpop.f32.mrb[0].mxu0
    %v889 = vadd.f32 %v713, %v888
    %v890 = vpop.f32.mrb[0].mxu0
    %891 = vmatprep.mubr.f32.mxu0 0.0
    %892 = vmatmul.mubr.f32.gmra.mrb[0].mxu0 %v762
    %v893 = vpop.f32.mrb[0].mxu0
    %v894 = vadd.f32 %v718, %v893
    %v895 = vpop.f32.mrb[0].mxu0
    %896 = vmatprep.mubr.f32.mxu0 0.0
    %897 = vmatmul.mubr.f32.gmra.mrb[0].mxu0 %v765
    %v898 = vpop.f32.mrb[0].mxu0
    %v899 = vadd.f32 %v723, %v898
    %v900 = vpop.f32.mrb[0].mxu0
    %901 = vdwg.mxu0
    %vm902 = vcmp.gt.f32.partialorder %v834, 0.0
    %vm903 = vcmp.gt.f32.partialorder %v839, 0.0
    %vm904 = vcmp.gt.f32.partialorder %v844, 0.0
    %vm905 = vcmp.gt.f32.partialorder %v849, 0.0
    %vm906 = vcmp.gt.f32.partialorder %v854, 0.0
    %vm907 = vcmp.gt.f32.partialorder %v859, 0.0
    %vm908 = vcmp.gt.f32.partialorder %v864, 0.0
    %vm909 = vcmp.gt.f32.partialorder %v869, 0.0
    %vm910 = vcmp.gt.f32.partialorder %v874, 0.0
    %vm911 = vcmp.gt.f32.partialorder %v879, 0.0
    %vm912 = vcmp.gt.f32.partialorder %v884, 0.0
    %vm913 = vcmp.gt.f32.partialorder %v889, 0.0
    %vm914 = vcmp.gt.f32.partialorder %v894, 0.0
    %vm915 = vcmp.gt.f32.partialorder %v899, 0.0
    %v916 = vmul.f32 %v834, 1.442695
    %v917 = vpow.pop %v916
    %v918 = vmul.f32 %v839, 1.442695
    %v919 = vpow.pop %v918
    %v920 = vmul.f32 %v844, 1.442695
    %v921 = vpow.pop %v920
    %v922 = vmul.f32 %v849, 1.442695
    %v923 = vpow.pop %v922
    %v924 = vmul.f32 %v854, 1.442695
    %v925 = vpow.pop %v924
    %v926 = vmul.f32 %v859, 1.442695
    %v927 = vpow.pop %v926
    %v928 = vmul.f32 %v864, 1.442695
    %v929 = vpow.pop %v928
    %v930 = vmul.f32 %v869, 1.442695
    %v931 = vpow.pop %v930
    %v932 = vmul.f32 %v874, 1.442695
    %v933 = vpow.pop %v932
    %v934 = vmul.f32 %v879, 1.442695
    %v935 = vpow.pop %v934
    %v936 = vmul.f32 %v884, 1.442695
    %v937 = vpow.pop %v936
    %v938 = vmul.f32 %v889, 1.442695
    %v939 = vpow.pop %v938
    %v940 = vmul.f32 %v894, 1.442695
    %v941 = vpow.pop %v940
    %v942 = vmul.f32 %v899, 1.442695
    %v943 = vpow.pop %v942
    %v944 = vsub.f32 %v917, 1.0
    %v945 = vsub.f32 %v919, 1.0
    %v946 = vsub.f32 %v921, 1.0
    %v947 = vsub.f32 %v923, 1.0
    %v948 = vsub.f32 %v925, 1.0
    %v949 = vsub.f32 %v927, 1.0
    %v950 = vsub.f32 %v929, 1.0
    %v951 = vsub.f32 %v931, 1.0
    %v952 = vsub.f32 %v933, 1.0
    %v953 = vsub.f32 %v935, 1.0
    %v954 = vsub.f32 %v937, 1.0
    %v955 = vsub.f32 %v939, 1.0
    %v956 = vsub.f32 %v941, 1.0
    %v957 = vsub.f32 %v943, 1.0
    %v958 = vsel %vm902, %v834, %v944
    %v959 = vsel %vm903, %v839, %v945
    %v960 = vsel %vm904, %v844, %v946
    %v961 = vsel %vm905, %v849, %v947
    %v962 = vsel %vm906, %v854, %v948
    %v963 = vsel %vm907, %v859, %v949
    %v964 = vsel %vm908, %v864, %v950
    %v965 = vsel %vm909, %v869, %v951
    %v966 = vsel %vm910, %v874, %v952
    %v967 = vsel %vm911, %v879, %v953
    %v968 = vsel %vm912, %v884, %v954
    %v969 = vsel %vm913, %v889, %v955
    %v970 = vsel %vm914, %v894, %v956
    %v971 = vsel %vm915, %v899, %v957
    %v972 = vld [vmem:[%s7] sm:$0xff]
    %v973 = vld [vmem:[%s7 + $0x8] sm:$0xff]
    %v974 = vld [vmem:[%s7 + $0x10] sm:$0xff]
    %v975 = vld [vmem:[%s7 + $0x18] sm:$0xff]
    %v976 = vld [vmem:[%s7 + $0x20] sm:$0xff]
    %v977 = vld [vmem:[%s7 + $0x28] sm:$0xff]
    %v978 = vld [vmem:[%s7 + $0x30] sm:$0xff]
    %v979 = vld [vmem:[%s7 + $0x38] sm:$0xff]
    %v980 = vld [vmem:[%s7 + $0x40] sm:$0xff]
    %v981 = vld [vmem:[%s7 + $0x48] sm:$0xff]
    %v982 = vld [vmem:[%s7 + $0x50] sm:$0xff]
    %v983 = vld [vmem:[%s7 + $0x58] sm:$0xff]
    %v984 = vld [vmem:[%s7 + $0x60] sm:$0xff]
    %v985 = vld [vmem:[%s7 + $0x68] sm:$0xff]
    %v986 = vld [vmem:[%s8] sm:$0xff]
    %v987 = vld [vmem:[%s8 + $0x8] sm:$0xff]
    %v988 = vld [vmem:[%s8 + $0x10] sm:$0xff]
    %v989 = vld [vmem:[%s8 + $0x18] sm:$0xff]
    %v990 = vld [vmem:[%s8 + $0x20] sm:$0xff]
    %v991 = vld [vmem:[%s8 + $0x28] sm:$0xff]
    %v992 = vld [vmem:[%s8 + $0x30] sm:$0xff]
    %v993 = vld [vmem:[%s8 + $0x38] sm:$0xff]
    %v994 = vld [vmem:[%s8 + $0x40] sm:$0xff]
    %v995 = vld [vmem:[%s8 + $0x48] sm:$0xff]
    %v996 = vld [vmem:[%s8 + $0x50] sm:$0xff]
    %v997 = vld [vmem:[%s8 + $0x58] sm:$0xff]
    %v998 = vld [vmem:[%s8 + $0x60] sm:$0xff]
    %v999 = vld [vmem:[%s8 + $0x68] sm:$0xff]
    %1001 = vset.pattern.permute.xlu0 0
    %1002 = vperm.xlu0 %1001, %v986
    %v1003 = vpop.permute.xlu0 %1002
    %1006 = vset.pattern.permute.xlu0 0
    %1007 = vperm.xlu0 %1006, %v987
    %v1008 = vpop.permute.xlu0 %1007
    %1011 = vset.pattern.permute.xlu0 0
    %1012 = vperm.xlu0 %1011, %v988
    %v1013 = vpop.permute.xlu0 %1012
    %1016 = vset.pattern.permute.xlu0 0
    %1017 = vperm.xlu0 %1016, %v989
    %v1018 = vpop.permute.xlu0 %1017
    %1021 = vset.pattern.permute.xlu0 0
    %1022 = vperm.xlu0 %1021, %v990
    %v1023 = vpop.permute.xlu0 %1022
    %1026 = vset.pattern.permute.xlu0 0
    %1027 = vperm.xlu0 %1026, %v991
    %v1028 = vpop.permute.xlu0 %1027
    %1031 = vset.pattern.permute.xlu0 0
    %1032 = vperm.xlu0 %1031, %v992
    %v1033 = vpop.permute.xlu0 %1032
    %1036 = vset.pattern.permute.xlu0 0
    %1037 = vperm.xlu0 %1036, %v993
    %v1038 = vpop.permute.xlu0 %1037
    %1041 = vset.pattern.permute.xlu0 0
    %1042 = vperm.xlu0 %1041, %v994
    %v1043 = vpop.permute.xlu0 %1042
    %1046 = vset.pattern.permute.xlu0 0
    %1047 = vperm.xlu0 %1046, %v995
    %v1048 = vpop.permute.xlu0 %1047
    %1051 = vset.pattern.permute.xlu0 0
    %1052 = vperm.xlu0 %1051, %v996
    %v1053 = vpop.permute.xlu0 %1052
    %1056 = vset.pattern.permute.xlu0 0
    %1057 = vperm.xlu0 %1056, %v997
    %v1058 = vpop.permute.xlu0 %1057
    %1061 = vset.pattern.permute.xlu0 0
    %1062 = vperm.xlu0 %1061, %v998
    %v1063 = vpop.permute.xlu0 %1062
    %1066 = vset.pattern.permute.xlu0 0
    %1067 = vperm.xlu0 %1066, %v999
    %v1068 = vpop.permute.xlu0 %1067
    %vm1070 = vcmask 916480
    %v1072 = vsel %vm1070, %v972, 0
    %v1075 = vsel %vm1070, %v973, 0
    %v1078 = vsel %vm1070, %v974, 0
    %v1081 = vsel %vm1070, %v975, 0
    %v1084 = vsel %vm1070, %v976, 0
    %v1087 = vsel %vm1070, %v977, 0
    %v1090 = vsel %vm1070, %v978, 0
    %v1093 = vsel %vm1070, %v979, 0
    %v1096 = vsel %vm1070, %v980, 0
    %v1099 = vsel %vm1070, %v981, 0
    %v1102 = vsel %vm1070, %v982, 0
    %v1105 = vsel %vm1070, %v983, 0
    %v1108 = vsel %vm1070, %v984, 0
    %v1111 = vsel %vm1070, %v985, 0
    %1113 = vmatprep.subr.mxu0 0.0
    %1114 = vmatpush1.msra.mxu0 %v958
    %1115 = vmatprep.subr.mxu0 0.0
    %1116 = vmatpush1.msra.mxu0 %v959
    %1117 = vmatprep.subr.mxu0 0.0
    %1118 = vmatpush1.msra.mxu0 %v960
    %1119 = vmatprep.subr.mxu0 0.0
    %1120 = vmatpush1.msra.mxu0 %v961
    %1121 = vmatprep.subr.mxu0 0.0
    %1122 = vmatpush1.msra.mxu0 %v962
    %1123 = vmatprep.subr.mxu0 0.0
    %1124 = vmatpush1.msra.mxu0 %v963
    %1125 = vmatprep.subr.mxu0 0.0
    %1126 = vmatpush1.msra.mxu0 %v964
    %1127 = vmatprep.subr.mxu0 0.0
    %1128 = vmatpush1.msra.mxu0 %v965
    %1129 = vmatprep.subr.mxu0 0.0
    %1130 = vmatpush1.msra.mxu0 %v966
    %1131 = vmatprep.subr.mxu0 0.0
    %1132 = vmatpush1.msra.mxu0 %v967
    %1133 = vmatprep.subr.mxu0 0.0
    %1134 = vmatpush1.msra.mxu0 %v968
    %1135 = vmatprep.subr.mxu0 0.0
    %1136 = vmatpush1.msra.mxu0 %v969
    %1137 = vmatprep.subr.mxu0 0.0
    %1138 = vmatpush1.msra.mxu0 %v970
    %1139 = vmatprep.subr.mxu0 0.0
    %1140 = vmatpush1.msra.mxu0 %v971
    %1141 = vmatprep.subr.mxu0 0.0
    %1142 = vmatpush1.msra.mxu0 0.0
    %1143 = vmatprep.subr.mxu0 0.0
    %1144 = vmatpush1.msra.mxu0 0.0
    %1145 = vmatprep.subr.mxu0 0.0
    %1146 = vmatpush1.msra.mxu0 0.0
    %1147 = vmatprep.subr.mxu0 0.0
    %1148 = vmatpush1.msra.mxu0 0.0
    %1149 = vmatprep.subr.mxu0 0.0
    %1150 = vmatpush1.msra.mxu0 0.0
    %1151 = vmatprep.subr.mxu0 0.0
    %1152 = vmatpush1.msra.mxu0 0.0
    %1153 = vmatprep.subr.mxu0 0.0
    %1154 = vmatpush1.msra.mxu0 0.0
    %1155 = vmatprep.subr.mxu0 0.0
    %1156 = vmatpush1.msra.mxu0 0.0
    %1157 = vmatprep.subr.mxu0 0.0
    %1158 = vmatpush1.msra.mxu0 0.0
    %1159 = vmatprep.subr.mxu0 0.0
    %1160 = vmatpush1.msra.mxu0 0.0
    %1161 = vmatprep.subr.mxu0 0.0
    %1162 = vmatpush1.msra.mxu0 0.0
    %1163 = vmatprep.subr.mxu0 0.0
    %1164 = vmatpush1.msra.mxu0 0.0
    %1165 = vmatprep.subr.mxu0 0.0
    %1166 = vmatpush1.msra.mxu0 0.0
    %1167 = vmatprep.subr.mxu0 0.0
    %1168 = vmatpush1.msra.mxu0 0.0
    %1169 = vmatprep.subr.mxu0 0.0
    %1170 = vmatpush1.msra.mxu0 0.0
    %1171 = vmatprep.subr.mxu0 0.0
    %1172 = vmatpush1.msra.mxu0 0.0
    %1173 = vmatprep.subr.mxu0 0.0
    %1174 = vmatpush1.msra.mxu0 0.0
    %1175 = vmatprep.subr.mxu0 0.0
    %1176 = vmatpush1.msra.mxu0 0.0
    %1177 = vmatprep.mubr.f32.mxu0 0.0
    %1178 = vmatmul.mubr.f32.gmra.mrb[0].mxu0 %v1072
    %v1179 = vpop.f32.mrb[0].mxu0
    %v1180 = vadd.f32 %v1003, %v1179
    %v1181 = vpop.f32.mrb[0].mxu0
    %1182 = vmatprep.mubr.f32.mxu0 0.0
    %1183 = vmatmul.mubr.f32.gmra.mrb[0].mxu0 %v1075
    %v1184 = vpop.f32.mrb[0].mxu0
    %v1185 = vadd.f32 %v1008, %v1184
    %v1186 = vpop.f32.mrb[0].mxu0
    %1187 = vmatprep.mubr.f32.mxu0 0.0
    %1188 = vmatmul.mubr.f32.gmra.mrb[0].mxu0 %v1078
    %v1189 = vpop.f32.mrb[0].mxu0
    %v1190 = vadd.f32 %v1013, %v1189
    %v1191 = vpop.f32.mrb[0].mxu0
    %1192 = vmatprep.mubr.f32.mxu0 0.0
    %1193 = vmatmul.mubr.f32.gmra.mrb[0].mxu0 %v1081
    %v1194 = vpop.f32.mrb[0].mxu0
    %v1195 = vadd.f32 %v1018, %v1194
    %v1196 = vpop.f32.mrb[0].mxu0
    %1197 = vmatprep.mubr.f32.mxu0 0.0
    %1198 = vmatmul.mubr.f32.gmra.mrb[0].mxu0 %v1084
    %v1199 = vpop.f32.mrb[0].mxu0
    %v1200 = vadd.f32 %v1023, %v1199
    %v1201 = vpop.f32.mrb[0].mxu0
    %1202 = vmatprep.mubr.f32.mxu0 0.0
    %1203 = vmatmul.mubr.f32.gmra.mrb[0].mxu0 %v1087
    %v1204 = vpop.f32.mrb[0].mxu0
    %v1205 = vadd.f32 %v1028, %v1204
    %v1206 = vpop.f32.mrb[0].mxu0
    %1207 = vmatprep.mubr.f32.mxu0 0.0
    %1208 = vmatmul.mubr.f32.gmra.mrb[0].mxu0 %v1090
    %v1209 = vpop.f32.mrb[0].mxu0
    %v1210 = vadd.f32 %v1033, %v1209
    %v1211 = vpop.f32.mrb[0].mxu0
    %1212 = vmatprep.mubr.f32.mxu0 0.0
    %1213 = vmatmul.mubr.f32.gmra.mrb[0].mxu0 %v1093
    %v1214 = vpop.f32.mrb[0].mxu0
    %v1215 = vadd.f32 %v1038, %v1214
    %v1216 = vpop.f32.mrb[0].mxu0
    %1217 = vmatprep.mubr.f32.mxu0 0.0
    %1218 = vmatmul.mubr.f32.gmra.mrb[0].mxu0 %v1096
    %v1219 = vpop.f32.mrb[0].mxu0
    %v1220 = vadd.f32 %v1043, %v1219
    %v1221 = vpop.f32.mrb[0].mxu0
    %1222 = vmatprep.mubr.f32.mxu0 0.0
    %1223 = vmatmul.mubr.f32.gmra.mrb[0].mxu0 %v1099
    %v1224 = vpop.f32.mrb[0].mxu0
    %v1225 = vadd.f32 %v1048, %v1224
    %v1226 = vpop.f32.mrb[0].mxu0
    %1227 = vmatprep.mubr.f32.mxu0 0.0
    %1228 = vmatmul.mubr.f32.gmra.mrb[0].mxu0 %v1102
    %v1229 = vpop.f32.mrb[0].mxu0
    %v1230 = vadd.f32 %v1053, %v1229
    %v1231 = vpop.f32.mrb[0].mxu0
    %1232 = vmatprep.mubr.f32.mxu0 0.0
    %1233 = vmatmul.mubr.f32.gmra.mrb[0].mxu0 %v1105
    %v1234 = vpop.f32.mrb[0].mxu0
    %v1235 = vadd.f32 %v1058, %v1234
    %v1236 = vpop.f32.mrb[0].mxu0
    %1237 = vmatprep.mubr.f32.mxu0 0.0
    %1238 = vmatmul.mubr.f32.gmra.mrb[0].mxu0 %v1108
    %v1239 = vpop.f32.mrb[0].mxu0
    %v1240 = vadd.f32 %v1063, %v1239
    %v1241 = vpop.f32.mrb[0].mxu0
    %1242 = vmatprep.mubr.f32.mxu0 0.0
    %1243 = vmatmul.mubr.f32.gmra.mrb[0].mxu0 %v1111
    %v1244 = vpop.f32.mrb[0].mxu0
    %v1245 = vadd.f32 %v1068, %v1244
    %v1246 = vpop.f32.mrb[0].mxu0
    %1247 = vdwg.mxu0
    %vm1248 = vcmp.gt.f32.partialorder %v1180, 0.0
    %vm1249 = vcmp.gt.f32.partialorder %v1185, 0.0
    %vm1250 = vcmp.gt.f32.partialorder %v1190, 0.0
    %vm1251 = vcmp.gt.f32.partialorder %v1195, 0.0
    %vm1252 = vcmp.gt.f32.partialorder %v1200, 0.0
    %vm1253 = vcmp.gt.f32.partialorder %v1205, 0.0
    %vm1254 = vcmp.gt.f32.partialorder %v1210, 0.0
    %vm1255 = vcmp.gt.f32.partialorder %v1215, 0.0
    %vm1256 = vcmp.gt.f32.partialorder %v1220, 0.0
    %vm1257 = vcmp.gt.f32.partialorder %v1225, 0.0
    %vm1258 = vcmp.gt.f32.partialorder %v1230, 0.0
    %vm1259 = vcmp.gt.f32.partialorder %v1235, 0.0
    %vm1260 = vcmp.gt.f32.partialorder %v1240, 0.0
    %vm1261 = vcmp.gt.f32.partialorder %v1245, 0.0
    %v1262 = vmul.f32 %v1180, 1.442695
    %v1263 = vpow.pop %v1262
    %v1264 = vmul.f32 %v1185, 1.442695
    %v1265 = vpow.pop %v1264
    %v1266 = vmul.f32 %v1190, 1.442695
    %v1267 = vpow.pop %v1266
    %v1268 = vmul.f32 %v1195, 1.442695
    %v1269 = vpow.pop %v1268
    %v1270 = vmul.f32 %v1200, 1.442695
    %v1271 = vpow.pop %v1270
    %v1272 = vmul.f32 %v1205, 1.442695
    %v1273 = vpow.pop %v1272
    %v1274 = vmul.f32 %v1210, 1.442695
    %v1275 = vpow.pop %v1274
    %v1276 = vmul.f32 %v1215, 1.442695
    %v1277 = vpow.pop %v1276
    %v1278 = vmul.f32 %v1220, 1.442695
    %v1279 = vpow.pop %v1278
    %v1280 = vmul.f32 %v1225, 1.442695
    %v1281 = vpow.pop %v1280
    %v1282 = vmul.f32 %v1230, 1.442695
    %v1283 = vpow.pop %v1282
    %v1284 = vmul.f32 %v1235, 1.442695
    %v1285 = vpow.pop %v1284
    %v1286 = vmul.f32 %v1240, 1.442695
    %v1287 = vpow.pop %v1286
    %v1288 = vmul.f32 %v1245, 1.442695
    %v1289 = vpow.pop %v1288
    %v1290 = vsub.f32 %v1263, 1.0
    %v1291 = vsub.f32 %v1265, 1.0
    %v1292 = vsub.f32 %v1267, 1.0
    %v1293 = vsub.f32 %v1269, 1.0
    %v1294 = vsub.f32 %v1271, 1.0
    %v1295 = vsub.f32 %v1273, 1.0
    %v1296 = vsub.f32 %v1275, 1.0
    %v1297 = vsub.f32 %v1277, 1.0
    %v1298 = vsub.f32 %v1279, 1.0
    %v1299 = vsub.f32 %v1281, 1.0
    %v1300 = vsub.f32 %v1283, 1.0
    %v1301 = vsub.f32 %v1285, 1.0
    %v1302 = vsub.f32 %v1287, 1.0
    %v1303 = vsub.f32 %v1289, 1.0
    %v1304 = vsel %vm1248, %v1180, %v1290
    %v1305 = vsel %vm1249, %v1185, %v1291
    %v1306 = vsel %vm1250, %v1190, %v1292
    %v1307 = vsel %vm1251, %v1195, %v1293
    %v1308 = vsel %vm1252, %v1200, %v1294
    %v1309 = vsel %vm1253, %v1205, %v1295
    %v1310 = vsel %vm1254, %v1210, %v1296
    %v1311 = vsel %vm1255, %v1215, %v1297
    %v1312 = vsel %vm1256, %v1220, %v1298
    %v1313 = vsel %vm1257, %v1225, %v1299
    %v1314 = vsel %vm1258, %v1230, %v1300
    %v1315 = vsel %vm1259, %v1235, %v1301
    %v1316 = vsel %vm1260, %v1240, %v1302
    %v1317 = vsel %vm1261, %v1245, %v1303
    %v1318 = vld [vmem:[%s9] sm:$0xff]
    %v1319 = vld [vmem:[%s9 + $0x8] sm:$0xff]
    %v1320 = vld [vmem:[%s10] sm:$0xff]
    %v1321 = vld [vmem:[%s10 + $0x8] sm:$0xff]
    %1323 = vset.pattern.permute.xlu0 0
    %1324 = vperm.xlu0 %1323, %v1320
    %v1325 = vpop.permute.xlu0 %1324
    %1328 = vset.pattern.permute.xlu0 0
    %1329 = vperm.xlu0 %1328, %v1321
    %v1330 = vpop.permute.xlu0 %1329
    %v1333 = vsel %vm1070, %v1318, 0
    %v1336 = vsel %vm1070, %v1319, 0
    %1338 = vmatprep.subr.mxu0 0.0
    %1339 = vmatpush1.msra.mxu0 %v1304
    %1340 = vmatprep.subr.mxu0 0.0
    %1341 = vmatpush1.msra.mxu0 %v1305
    %1342 = vmatprep.subr.mxu0 0.0
    %1343 = vmatpush1.msra.mxu0 %v1306
    %1344 = vmatprep.subr.mxu0 0.0
    %1345 = vmatpush1.msra.mxu0 %v1307
    %1346 = vmatprep.subr.mxu0 0.0
    %1347 = vmatpush1.msra.mxu0 %v1308
    %1348 = vmatprep.subr.mxu0 0.0
    %1349 = vmatpush1.msra.mxu0 %v1309
    %1350 = vmatprep.subr.mxu0 0.0
    %1351 = vmatpush1.msra.mxu0 %v1310
    %1352 = vmatprep.subr.mxu0 0.0
    %1353 = vmatpush1.msra.mxu0 %v1311
    %1354 = vmatprep.subr.mxu0 0.0
    %1355 = vmatpush1.msra.mxu0 %v1312
    %1356 = vmatprep.subr.mxu0 0.0
    %1357 = vmatpush1.msra.mxu0 %v1313
    %1358 = vmatprep.subr.mxu0 0.0
    %1359 = vmatpush1.msra.mxu0 %v1314
    %1360 = vmatprep.subr.mxu0 0.0
    %1361 = vmatpush1.msra.mxu0 %v1315
    %1362 = vmatprep.subr.mxu0 0.0
    %1363 = vmatpush1.msra.mxu0 %v1316
    %1364 = vmatprep.subr.mxu0 0.0
    %1365 = vmatpush1.msra.mxu0 %v1317
    %1366 = vmatprep.subr.mxu0 0.0
    %1367 = vmatpush1.msra.mxu0 0.0
    %1368 = vmatprep.subr.mxu0 0.0
    %1369 = vmatpush1.msra.mxu0 0.0
    %1370 = vmatprep.subr.mxu0 0.0
    %1371 = vmatpush1.msra.mxu0 0.0
    %1372 = vmatprep.subr.mxu0 0.0
    %1373 = vmatpush1.msra.mxu0 0.0
    %1374 = vmatprep.subr.mxu0 0.0
    %1375 = vmatpush1.msra.mxu0 0.0
    %1376 = vmatprep.subr.mxu0 0.0
    %1377 = vmatpush1.msra.mxu0 0.0
    %1378 = vmatprep.subr.mxu0 0.0
    %1379 = vmatpush1.msra.mxu0 0.0
    %1380 = vmatprep.subr.mxu0 0.0
    %1381 = vmatpush1.msra.mxu0 0.0
    %1382 = vmatprep.subr.mxu0 0.0
    %1383 = vmatpush1.msra.mxu0 0.0
    %1384 = vmatprep.subr.mxu0 0.0
    %1385 = vmatpush1.msra.mxu0 0.0
    %1386 = vmatprep.subr.mxu0 0.0
    %1387 = vmatpush1.msra.mxu0 0.0
    %1388 = vmatprep.subr.mxu0 0.0
    %1389 = vmatpush1.msra.mxu0 0.0
    %1390 = vmatprep.subr.mxu0 0.0
    %1391 = vmatpush1.msra.mxu0 0.0
    %1392 = vmatprep.subr.mxu0 0.0
    %1393 = vmatpush1.msra.mxu0 0.0
    %1394 = vmatprep.subr.mxu0 0.0
    %1395 = vmatpush1.msra.mxu0 0.0
    %1396 = vmatprep.subr.mxu0 0.0
    %1397 = vmatpush1.msra.mxu0 0.0
    %1398 = vmatprep.subr.mxu0 0.0
    %1399 = vmatpush1.msra.mxu0 0.0
    %1400 = vmatprep.subr.mxu0 0.0
    %1401 = vmatpush1.msra.mxu0 0.0
    %1402 = vmatprep.mubr.f32.mxu0 0.0
    %1403 = vmatmul.mubr.f32.gmra.mrb[0].mxu0 %v1333
    %v1404 = vpop.f32.mrb[0].mxu0
    %v1405 = vadd.f32 %v1325, %v1404
    %v1406 = vpop.f32.mrb[0].mxu0
    %1407 = vmatprep.mubr.f32.mxu0 0.0
    %1408 = vmatmul.mubr.f32.gmra.mrb[0].mxu0 %v1336
    %v1409 = vpop.f32.mrb[0].mxu0
    %v1410 = vadd.f32 %v1330, %v1409
    %v1411 = vpop.f32.mrb[0].mxu0
    %1412 = vdwg.mxu0
    %1413 = vst [vmem:[#allocation2] sm:$0xff] %v1405
    %1414 = vst [vmem:[#allocation2 + $0x8] sm:$0xff] %v1410
    // Predicated region
    $region46: #{tpu_custom_call.1} parent=1 // pred_check
      _
    $region47: #{tpu_custom_call.1} parent=1 // pred_check_branch
      %1416 = sbr.rel (0) target = $region49
    $region48: #{tpu_custom_call.1} parent=1 // pred_region
      %s1418 = ssub.s32 256, 256
      %1419 = vsyncadd [#allocation3], %s1418
      %s1420 = sshll.u32 [#allocation2], 4
      %s1421 = int_to_ptr.vmem [resolvable:$true] %s1420
      %1426 = dma.vmem_to_hbm [thread:$0]  %s1421, 256, %s11, [#allocation3], 128, 128, 8
    $region49: #{tpu_custom_call.1} parent=1 // pred_fallthru
      _
    // Predicated region
    $region50: #{tpu_custom_call.1} parent=1 // pred_check
      _
    $region51: #{tpu_custom_call.1} parent=1 // pred_check_branch
      %1428 = sbr.rel (0) target = $region53
    $region52: #{tpu_custom_call.1} parent=1 // pred_region
      %1429 = dma.done [#allocation3], 256
    $region53: #{tpu_custom_call.1} parent=1 // pred_fallthru
      _
    %1430 = vsyncpa [#allocation3], 1

</llo_original>
